<compile_context>
chip_gen: v6e
topology: v6e:2x2x1
jax: 0.10.0
libtpu: 0.0.40
codegen_flags: <defaults>
</compile_context>

<pallas_src>
import functools
import math

import jax
import jax.numpy as jnp
from jax import lax
from jax.experimental import pallas as pl
from jax.experimental.pallas import tpu as pltpu


def _mha_kernel(q_ref, k_ref, v_ref,
                wq_ref, bq_ref, wo_ref, bo_ref,
                gamma_ref, beta_ref,
                *rest, n_head, l_pad, scale, emit_weights):
    if emit_weights:
        out_ref, w_ref, qkv_s, ctx_s = rest
    else:
        out_ref, qkv_s, ctx_s = rest
        w_ref = None

    L = q_ref.shape[1]
    D = q_ref.shape[2]
    d_k = D // n_head

    # Zero the packed-operand scratch once so the padded slab rows are defined
    # (they feed the fused matmul but their outputs are never read).
    @pl.when(pl.program_id(0) == 0)
    def _():
        qkv_s[...] = jnp.zeros_like(qkv_s)

    # ---- pack q|k|v into a slab-aligned bf16 MXU operand (16-row slabs).
    qkv_s[0 * l_pad:0 * l_pad + L, :] = q_ref[0].astype(jnp.bfloat16)
    qkv_s[1 * l_pad:1 * l_pad + L, :] = k_ref[0]          # already bf16
    qkv_s[2 * l_pad:2 * l_pad + L, :] = v_ref[0]          # already bf16

    # ---- ONE fused projection: (3*l_pad, D) x (D, D) -> full-lane MXU fill.
    proj = jnp.dot(qkv_s[...], wq_ref[...],
                   preferred_element_type=jnp.float32) + bq_ref[...]   # f32

    q_b = (proj[0 * l_pad:0 * l_pad + L] * scale).astype(jnp.bfloat16)  # scale folded into q
    k_b = proj[1 * l_pad:1 * l_pad + L].astype(jnp.bfloat16)
    v_b = proj[2 * l_pad:2 * l_pad + L].astype(jnp.bfloat16)

    # ---- per-head attention, statically unrolled (static lane offsets).
    for h in range(n_head):
        lo = h * d_k
        qh = q_b[:, lo:lo + d_k]
        kh = k_b[:, lo:lo + d_k]
        vh = v_b[:, lo:lo + d_k]

        # scores = qh @ kh.T (contraction on dim 1 of both -> MXU, no XLU .T)
        scores = lax.dot_general(
            qh, kh, dimension_numbers=(((1,), (1,)), ((), ())),
            preferred_element_type=jnp.float32)             # (L, L) f32

        # softmax in f32; exact divide so weights sum to 1.
        m = jnp.max(scores, axis=-1, keepdims=True)
        e = jnp.exp(scores - m)
        denom = jnp.sum(e, axis=-1, keepdims=True)
        p = e / denom                                       # (L, L) f32

        if emit_weights:
            w_ref[0, h] = p.astype(w_ref.dtype)

        # attention dropout: identity in eval mode
        ctx_h = jnp.dot(p.astype(jnp.bfloat16), vh,
                        preferred_element_type=jnp.float32)  # (L, d_k) f32
        ctx_s[:, lo:lo + d_k] = ctx_h.astype(jnp.bfloat16)

    # ---- ONE full-width output projection: (L, D) x (D, D), K = D.
    o = jnp.dot(ctx_s[...], wo_ref[...],
                preferred_element_type=jnp.float32) + bo_ref[...]       # (L, D) f32

    # ---- residual + LayerNorm(eps=1e-6), EUP rsqrt.  Output dropout = id.
    x = q_ref[0].astype(jnp.float32) + o
    mean = jnp.mean(x, axis=-1, keepdims=True)
    xc = x - mean
    var = jnp.mean(xc * xc, axis=-1, keepdims=True)
    normed = xc * lax.rsqrt(var + 1e-6)
    out_ref[0] = (normed * gamma_ref[...] + beta_ref[...]).astype(out_ref.dtype)


def multi_head_attention(q, k, v, params, *, n_head, return_weights=True):
    B, L, D = q.shape
    d_k = D // n_head
    wq, bq, wo, bo, gamma, beta = params

    # Slab alignment: bf16 packs 16 rows per vreg; start each q/k/v slab on a
    # 16-row boundary so the pack stores stay full-tile.
    l_pad = ((L + 15) // 16) * 16

    # PyTorch nn.Linear convention: y = x @ W.T + b.  Pre-transpose and
    # pre-cast to bf16 in the wrapper; weights are grid-resident (DMA'd once).
    wq_t = wq.T.astype(jnp.bfloat16)                 # (D, D)
    wo_t = wo.T.astype(jnp.bfloat16)                 # (D, D)
    bq2 = bq.reshape(1, D).astype(jnp.float32)
    bo2 = bo.reshape(1, D).astype(jnp.float32)
    gamma2 = gamma.reshape(1, D).astype(jnp.float32)
    beta2 = beta.reshape(1, D).astype(jnp.float32)

    # k/v are only ever bf16 MXU operands -> cast at the boundary (half the
    # DMA bytes).  q stays f32 for the residual / LayerNorm path.
    k_b = k.astype(jnp.bfloat16)
    v_b = v.astype(jnp.bfloat16)

    kernel = functools.partial(_mha_kernel,
                               n_head=n_head,
                               l_pad=l_pad,
                               scale=1.0 / math.sqrt(D),   # Attention uses model_size
                               emit_weights=return_weights)

    out_shape = [jax.ShapeDtypeStruct((B, L, D), q.dtype)]
    out_specs = [pl.BlockSpec((1, L, D), lambda b: (b, 0, 0))]
    if return_weights:
        out_shape.append(jax.ShapeDtypeStruct((B, n_head, L, L), jnp.float32))
        out_specs.append(pl.BlockSpec((1, n_head, L, L), lambda b: (b, 0, 0, 0)))

    results = pl.pallas_call(
        kernel,
        out_shape=tuple(out_shape),
        grid=(B,),
        in_specs=[
            pl.BlockSpec((1, L, D), lambda b: (b, 0, 0)),   # q (also residual), f32
            pl.BlockSpec((1, L, D), lambda b: (b, 0, 0)),   # k, bf16
            pl.BlockSpec((1, L, D), lambda b: (b, 0, 0)),   # v, bf16
            pl.BlockSpec((D, D), lambda b: (0, 0)),         # W_q^T   (resident)
            pl.BlockSpec((1, D), lambda b: (0, 0)),         # b_q     (resident)
            pl.BlockSpec((D, D), lambda b: (0, 0)),         # W_out^T (resident)
            pl.BlockSpec((1, D), lambda b: (0, 0)),         # b_out   (resident)
            pl.BlockSpec((1, D), lambda b: (0, 0)),         # ln gamma
            pl.BlockSpec((1, D), lambda b: (0, 0)),         # ln beta
        ],
        out_specs=tuple(out_specs),
        scratch_shapes=[
            pltpu.VMEM((3 * l_pad, D), jnp.bfloat16),   # packed q|k|v operand
            pltpu.VMEM((L, D), jnp.bfloat16),           # per-head ctx slabs
        ],
        compiler_params=pltpu.CompilerParams(
            dimension_semantics=("parallel",),
            vmem_limit_bytes=32 * 1024 * 1024,   # fits v7x's 64 MiB physical VMEM
        ),
    )(q, k_b, v_b, wq_t, bq2, wo_t, bo2, gamma2, beta2)

    if return_weights:
        out, w = results
        # PyTorch returns w with shape (B*h, L, L); batch-major, then head.
        return out, w.reshape(B * n_head, L, L)
    (out,) = results
    return out, None


def ref_mha(q, k, v, params, n_head):
    """Pure-JAX f32 reference replicating the PyTorch forward (eval mode)."""
    wq, bq, wo, bo, gamma, beta = params
    B, L, D = q.shape
    d_k = D // n_head

    def proj(x):
        return x @ wq.T + bq   # linear_q projects q, k AND v (as in the module)

    qp = proj(q).reshape(B, L, n_head, d_k).transpose(0, 2, 1, 3)
    kp = proj(k).reshape(B, L, n_head, d_k).transpose(0, 2, 1, 3)
    vp = proj(v).reshape(B, L, n_head, d_k).transpose(0, 2, 1, 3)

    scores = jnp.einsum('bhqd,bhkd->bhqk', qp, kp) / math.sqrt(D)
    w = jax.nn.softmax(scores, axis=-1)
    o = jnp.einsum('bhqk,bhkd->bhqd', w, vp)
    o = o.transpose(0, 2, 1, 3).reshape(B, L, D)
    o = o @ wo.T + bo

    x = q + o
    mean = x.mean(-1, keepdims=True)
    var = ((x - mean) ** 2).mean(-1, keepdims=True)
    out = (x - mean) / jnp.sqrt(var + 1e-6) * gamma + beta
    return out, w.reshape(B * n_head, L, L)


if __name__ == "__main__":
    B, L, D, H = 2, 8, 32, 4
    key = jax.random.PRNGKey(0)
    keys = jax.random.split(key, 8)

    q = jax.random.normal(keys[0], (B, L, D), jnp.float32)
    k = jax.random.normal(keys[1], (B, L, D), jnp.float32)
    v = jax.random.normal(keys[2], (B, L, D), jnp.float32)

    # Deterministic parameter init (nn.Linear-style uniform bound).
    bound = 1.0 / math.sqrt(D)
    wq = jax.random.uniform(keys[3], (D, D), jnp.float32, -bound, bound)
    bq = jax.random.uniform(keys[4], (D,), jnp.float32, -bound, bound)
    wo = jax.random.uniform(keys[5], (D, D), jnp.float32, -bound, bound)
    bo = jax.random.uniform(keys[6], (D,), jnp.float32, -bound, bound)
    gamma = jnp.ones((D,), jnp.float32)   # LayerNorm weight init
    beta = jnp.zeros((D,), jnp.float32)   # LayerNorm bias init

    params = (wq, bq, wo, bo, gamma, beta)

    out, w = multi_head_attention(q, k, v, params, n_head=H)
    jax.block_until_ready((out, w))

    out_expected, w_expected = ref_mha(q, k, v, params, H)
    assert out.shape == (B, L, D) and w.shape == (B * H, L, L)
    # bf16 MXU operands (f32 accumulation) -> relaxed tolerances vs f32 ref.
    assert jnp.allclose(out, out_expected, atol=3e-2, rtol=3e-2), \
        float(jnp.max(jnp.abs(out - out_expected)))
    assert jnp.allclose(w, w_expected, atol=1e-2, rtol=1e-2), \
        float(jnp.max(jnp.abs(w - w_expected)))

    # Variant that skips the O(B*H*L^2) attention-weights writeback entirely.
    out2, w2 = multi_head_attention(q, k, v, params, n_head=H, return_weights=False)
    jax.block_until_ready(out2)
    assert w2 is None
    assert jnp.allclose(out2, out, atol=1e-5, rtol=1e-5)

    print("KERNEL_OK")
</pallas_src>

<mosaic_0001>
module attributes {stable_mosaic.version = 11 : i64} {
  func.func @_mha_kernel(%arg0: i32, %arg1: memref<1x8x32xf32, #tpu.memory_space<vmem>>, %arg2: memref<1x8x32xbf16, #tpu.memory_space<vmem>>, %arg3: memref<1x8x32xbf16, #tpu.memory_space<vmem>>, %arg4: memref<32x32xbf16, #tpu.memory_space<vmem>>, %arg5: memref<1x32xf32, #tpu.memory_space<vmem>>, %arg6: memref<32x32xbf16, #tpu.memory_space<vmem>>, %arg7: memref<1x32xf32, #tpu.memory_space<vmem>>, %arg8: memref<1x32xf32, #tpu.memory_space<vmem>>, %arg9: memref<1x32xf32, #tpu.memory_space<vmem>>, %arg10: memref<1x8x32xf32, #tpu.memory_space<vmem>>, %arg11: memref<1x4x8x8xf32, #tpu.memory_space<vmem>>, %arg12: memref<48x32xbf16, #tpu.memory_space<vmem>>, %arg13: memref<8x32xbf16, #tpu.memory_space<vmem>>) attributes {dimension_semantics = [#tpu.dimension_semantics<parallel>], iteration_bounds = array<i64: 2>, scalar_prefetch = 0 : i64, scratch_operands = 2 : i64, tpu.core_type = #tpu.core_type<tc>, window_params = [{transform_indices = @transform_0, window_bounds = array<i64: 1, 8, 32>}, {transform_indices = @transform_1, window_bounds = array<i64: 1, 8, 32>}, {transform_indices = @transform_2, window_bounds = array<i64: 1, 8, 32>}, {pipeline_mode = #tpu.pipeline_mode<synchronous>, transform_indices = @transform_3, window_bounds = array<i64: 32, 32>}, {pipeline_mode = #tpu.pipeline_mode<synchronous>, transform_indices = @transform_4, window_bounds = array<i64: 1, 32>}, {pipeline_mode = #tpu.pipeline_mode<synchronous>, transform_indices = @transform_5, window_bounds = array<i64: 32, 32>}, {pipeline_mode = #tpu.pipeline_mode<synchronous>, transform_indices = @transform_6, window_bounds = array<i64: 1, 32>}, {pipeline_mode = #tpu.pipeline_mode<synchronous>, transform_indices = @transform_7, window_bounds = array<i64: 1, 32>}, {pipeline_mode = #tpu.pipeline_mode<synchronous>, transform_indices = @transform_8, window_bounds = array<i64: 1, 32>}, {transform_indices = @transform_9, window_bounds = array<i64: 1, 8, 32>}, {transform_indices = @transform_10, window_bounds = array<i64: 1, 4, 8, 8>}]} {
    %c0_i32 = arith.constant 0 : i32
    %0 = arith.cmpi eq, %arg0, %c0_i32 : i32
    %1 = arith.extui %0 : i1 to i32
    %c0_i32_0 = arith.constant 0 : i32
    %2 = arith.cmpi ne, %1, %c0_i32_0 : i32
    scf.if %2 {
      %cst_77 = arith.constant 0.000000e+00 : bf16
      %141 = vector.broadcast %cst_77 : bf16 to vector<48x32xbf16>
      %c0_78 = arith.constant 0 : index
      %c0_79 = arith.constant 0 : index
      %142 = vector.load %arg12[%c0_78, %c0_79] : memref<48x32xbf16, #tpu.memory_space<vmem>>, vector<48x32xbf16>
      tpu.vector_store %arg12[%c0_78, %c0_79], %141 {strides = array<i32>} : memref<48x32xbf16, #tpu.memory_space<vmem>>, vector<48x32xbf16>,
    } else {
    }
    %c0 = arith.constant 0 : index
    %c0_1 = arith.constant 0 : index
    %c0_2 = arith.constant 0 : index
    %3 = vector.load %arg1[%c0, %c0_1, %c0_2] : memref<1x8x32xf32, #tpu.memory_space<vmem>>, vector<1x8x32xf32>
    %4 = vector.shape_cast %3 : vector<1x8x32xf32> to vector<8x32xf32>
    %5 = arith.truncf %4 : vector<8x32xf32> to vector<8x32xbf16>
    %c0_3 = arith.constant 0 : index
    %c0_4 = arith.constant 0 : index
    %6 = vector.load %arg12[%c0_3, %c0_4] : memref<48x32xbf16, #tpu.memory_space<vmem>>, vector<8x32xbf16>
    tpu.vector_store %arg12[%c0_3, %c0_4], %5 {strides = array<i32>} : memref<48x32xbf16, #tpu.memory_space<vmem>>, vector<8x32xbf16>,
    %c0_5 = arith.constant 0 : index
    %c0_6 = arith.constant 0 : index
    %c0_7 = arith.constant 0 : index
    %7 = vector.load %arg2[%c0_5, %c0_6, %c0_7] : memref<1x8x32xbf16, #tpu.memory_space<vmem>>, vector<1x8x32xbf16>
    %8 = vector.shape_cast %7 : vector<1x8x32xbf16> to vector<8x32xbf16>
    %c16 = arith.constant 16 : index
    %c0_8 = arith.constant 0 : index
    %9 = vector.load %arg12[%c16, %c0_8] : memref<48x32xbf16, #tpu.memory_space<vmem>>, vector<8x32xbf16>
    tpu.vector_store %arg12[%c16, %c0_8], %8 {strides = array<i32>} : memref<48x32xbf16, #tpu.memory_space<vmem>>, vector<8x32xbf16>,
    %c0_9 = arith.constant 0 : index
    %c0_10 = arith.constant 0 : index
    %c0_11 = arith.constant 0 : index
    %10 = vector.load %arg3[%c0_9, %c0_10, %c0_11] : memref<1x8x32xbf16, #tpu.memory_space<vmem>>, vector<1x8x32xbf16>
    %11 = vector.shape_cast %10 : vector<1x8x32xbf16> to vector<8x32xbf16>
    %c32 = arith.constant 32 : index
    %c0_12 = arith.constant 0 : index
    %12 = vector.load %arg12[%c32, %c0_12] : memref<48x32xbf16, #tpu.memory_space<vmem>>, vector<8x32xbf16>
    tpu.vector_store %arg12[%c32, %c0_12], %11 {strides = array<i32>} : memref<48x32xbf16, #tpu.memory_space<vmem>>, vector<8x32xbf16>,
    %c0_13 = arith.constant 0 : index
    %c0_14 = arith.constant 0 : index
    %13 = vector.load %arg12[%c0_13, %c0_14] : memref<48x32xbf16, #tpu.memory_space<vmem>>, vector<48x32xbf16>
    %c0_15 = arith.constant 0 : index
    %c0_16 = arith.constant 0 : index
    %14 = vector.load %arg4[%c0_15, %c0_16] : memref<32x32xbf16, #tpu.memory_space<vmem>>, vector<32x32xbf16>
    %cst = arith.constant dense<0.000000e+00> : vector<48x32xf32>
    %15 = tpu.matmul %13, %14, %cst {dimension_numbers = #tpu.dot_dimension_numbers<[1], [0], [0], [1], [0, 0, 1, 1], [], []>} : vector<48x32xbf16>, vector<32x32xbf16>, vector<48x32xf32> -> vector<48x32xf32>
    %c0_17 = arith.constant 0 : index
    %c0_18 = arith.constant 0 : index
    %16 = vector.load %arg5[%c0_17, %c0_18] : memref<1x32xf32, #tpu.memory_space<vmem>>, vector<1x32xf32>
    %17 = vector.broadcast %16 : vector<1x32xf32> to vector<48x32xf32>
    %18 = arith.addf %15, %17 : vector<48x32xf32>
    %19 = vector.extract_strided_slice %18 {offsets = [0, 0], sizes = [8, 32], strides = [1, 1]} : vector<48x32xf32> to vector<8x32xf32>
    %cst_19 = arith.constant 0.176776692 : f32
    %20 = vector.broadcast %cst_19 : f32 to vector<8x32xf32>
    %21 = arith.mulf %19, %20 : vector<8x32xf32>
    %22 = arith.truncf %21 : vector<8x32xf32> to vector<8x32xbf16>
    %23 = vector.extract_strided_slice %18 {offsets = [16, 0], sizes = [8, 32], strides = [1, 1]} : vector<48x32xf32> to vector<8x32xf32>
    %24 = arith.truncf %23 : vector<8x32xf32> to vector<8x32xbf16>
    %25 = vector.extract_strided_slice %18 {offsets = [32, 0], sizes = [8, 32], strides = [1, 1]} : vector<48x32xf32> to vector<8x32xf32>
    %26 = arith.truncf %25 : vector<8x32xf32> to vector<8x32xbf16>
    %27 = vector.extract_strided_slice %22 {offsets = [0, 0], sizes = [8, 8], strides = [1, 1]} : vector<8x32xbf16> to vector<8x8xbf16>
    %28 = vector.extract_strided_slice %24 {offsets = [0, 0], sizes = [8, 8], strides = [1, 1]} : vector<8x32xbf16> to vector<8x8xbf16>
    %29 = vector.extract_strided_slice %26 {offsets = [0, 0], sizes = [8, 8], strides = [1, 1]} : vector<8x32xbf16> to vector<8x8xbf16>
    %cst_20 = arith.constant dense<0.000000e+00> : vector<8x8xf32>
    %30 = tpu.matmul %27, %28, %cst_20 {dimension_numbers = #tpu.dot_dimension_numbers<[1], [1], [0], [0], [0, 0, 1, 0], [], []>} : vector<8x8xbf16>, vector<8x8xbf16>, vector<8x8xf32> -> vector<8x8xf32>
    %cst_21 = arith.constant dense<0xFF800000> : vector<8xf32>
    %31 = vector.multi_reduction <maximumf>, %30, %cst_21 [1] : vector<8x8xf32> to vector<8xf32>
    %32 = vector.shape_cast %31 : vector<8xf32> to vector<8x1xf32>
    %33 = vector.broadcast %32 : vector<8x1xf32> to vector<8x8xf32>
    %34 = arith.subf %30, %33 : vector<8x8xf32>
    %35 = math.exp %34 : vector<8x8xf32>
    %cst_22 = arith.constant dense<0.000000e+00> : vector<8xf32>
    %36 = vector.multi_reduction <add>, %35, %cst_22 [1] : vector<8x8xf32> to vector<8xf32>
    %37 = vector.shape_cast %36 : vector<8xf32> to vector<8x1xf32>
    %38 = vector.broadcast %37 : vector<8x1xf32> to vector<8x8xf32>
    %39 = arith.divf %35, %38 : vector<8x8xf32>
    %c0_23 = arith.constant 0 : index
    %c0_24 = arith.constant 0 : index
    %c0_25 = arith.constant 0 : index
    %c0_26 = arith.constant 0 : index
    %40 = vector.load %arg11[%c0_23, %c0_24, %c0_25, %c0_26] : memref<1x4x8x8xf32, #tpu.memory_space<vmem>>, vector<1x1x8x8xf32>
    %41 = vector.shape_cast %40 : vector<1x1x8x8xf32> to vector<8x8xf32>
    %42 = vector.shape_cast %39 : vector<8x8xf32> to vector<1x1x8x8xf32>
    tpu.vector_store %arg11[%c0_23, %c0_24, %c0_25, %c0_26], %42 {strides = array<i32>} : memref<1x4x8x8xf32, #tpu.memory_space<vmem>>, vector<1x1x8x8xf32>,
    %43 = arith.truncf %39 : vector<8x8xf32> to vector<8x8xbf16>
    %cst_27 = arith.constant dense<0.000000e+00> : vector<8x8xf32>
    %44 = tpu.matmul %43, %29, %cst_27 {dimension_numbers = #tpu.dot_dimension_numbers<[1], [0], [0], [1], [0, 0, 1, 1], [], []>} : vector<8x8xbf16>, vector<8x8xbf16>, vector<8x8xf32> -> vector<8x8xf32>
    %45 = arith.truncf %44 : vector<8x8xf32> to vector<8x8xbf16>
    %c0_28 = arith.constant 0 : index
    %c0_29 = arith.constant 0 : index
    %46 = vector.load %arg13[%c0_28, %c0_29] : memref<8x32xbf16, #tpu.memory_space<vmem>>, vector<8x8xbf16>
    tpu.vector_store %arg13[%c0_28, %c0_29], %45 {strides = array<i32>} : memref<8x32xbf16, #tpu.memory_space<vmem>>, vector<8x8xbf16>,
    %47 = vector.extract_strided_slice %22 {offsets = [0, 8], sizes = [8, 8], strides = [1, 1]} : vector<8x32xbf16> to vector<8x8xbf16>
    %48 = vector.extract_strided_slice %24 {offsets = [0, 8], sizes = [8, 8], strides = [1, 1]} : vector<8x32xbf16> to vector<8x8xbf16>
    %49 = vector.extract_strided_slice %26 {offsets = [0, 8], sizes = [8, 8], strides = [1, 1]} : vector<8x32xbf16> to vector<8x8xbf16>
    %cst_30 = arith.constant dense<0.000000e+00> : vector<8x8xf32>
    %50 = tpu.matmul %47, %48, %cst_30 {dimension_numbers = #tpu.dot_dimension_numbers<[1], [1], [0], [0], [0, 0, 1, 0], [], []>} : vector<8x8xbf16>, vector<8x8xbf16>, vector<8x8xf32> -> vector<8x8xf32>
    %cst_31 = arith.constant dense<0xFF800000> : vector<8xf32>
    %51 = vector.multi_reduction <maximumf>, %50, %cst_31 [1] : vector<8x8xf32> to vector<8xf32>
    %52 = vector.shape_cast %51 : vector<8xf32> to vector<8x1xf32>
    %53 = vector.broadcast %52 : vector<8x1xf32> to vector<8x8xf32>
    %54 = arith.subf %50, %53 : vector<8x8xf32>
    %55 = math.exp %54 : vector<8x8xf32>
    %cst_32 = arith.constant dense<0.000000e+00> : vector<8xf32>
    %56 = vector.multi_reduction <add>, %55, %cst_32 [1] : vector<8x8xf32> to vector<8xf32>
    %57 = vector.shape_cast %56 : vector<8xf32> to vector<8x1xf32>
    %58 = vector.broadcast %57 : vector<8x1xf32> to vector<8x8xf32>
    %59 = arith.divf %55, %58 : vector<8x8xf32>
    %c0_33 = arith.constant 0 : index
    %c1 = arith.constant 1 : index
    %c0_34 = arith.constant 0 : index
    %c0_35 = arith.constant 0 : index
    %60 = vector.load %arg11[%c0_33, %c1, %c0_34, %c0_35] : memref<1x4x8x8xf32, #tpu.memory_space<vmem>>, vector<1x1x8x8xf32>
    %61 = vector.shape_cast %60 : vector<1x1x8x8xf32> to vector<8x8xf32>
    %62 = vector.shape_cast %59 : vector<8x8xf32> to vector<1x1x8x8xf32>
    tpu.vector_store %arg11[%c0_33, %c1, %c0_34, %c0_35], %62 {strides = array<i32>} : memref<1x4x8x8xf32, #tpu.memory_space<vmem>>, vector<1x1x8x8xf32>,
    %63 = arith.truncf %59 : vector<8x8xf32> to vector<8x8xbf16>
    %cst_36 = arith.constant dense<0.000000e+00> : vector<8x8xf32>
    %64 = tpu.matmul %63, %49, %cst_36 {dimension_numbers = #tpu.dot_dimension_numbers<[1], [0], [0], [1], [0, 0, 1, 1], [], []>} : vector<8x8xbf16>, vector<8x8xbf16>, vector<8x8xf32> -> vector<8x8xf32>
    %65 = arith.truncf %64 : vector<8x8xf32> to vector<8x8xbf16>
    %c0_37 = arith.constant 0 : index
    %c8 = arith.constant 8 : index
    %66 = vector.load %arg13[%c0_37, %c8] : memref<8x32xbf16, #tpu.memory_space<vmem>>, vector<8x8xbf16>
    tpu.vector_store %arg13[%c0_37, %c8], %65 {strides = array<i32>} : memref<8x32xbf16, #tpu.memory_space<vmem>>, vector<8x8xbf16>,
    %67 = vector.extract_strided_slice %22 {offsets = [0, 16], sizes = [8, 8], strides = [1, 1]} : vector<8x32xbf16> to vector<8x8xbf16>
    %68 = vector.extract_strided_slice %24 {offsets = [0, 16], sizes = [8, 8], strides = [1, 1]} : vector<8x32xbf16> to vector<8x8xbf16>
    %69 = vector.extract_strided_slice %26 {offsets = [0, 16], sizes = [8, 8], strides = [1, 1]} : vector<8x32xbf16> to vector<8x8xbf16>
    %cst_38 = arith.constant dense<0.000000e+00> : vector<8x8xf32>
    %70 = tpu.matmul %67, %68, %cst_38 {dimension_numbers = #tpu.dot_dimension_numbers<[1], [1], [0], [0], [0, 0, 1, 0], [], []>} : vector<8x8xbf16>, vector<8x8xbf16>, vector<8x8xf32> -> vector<8x8xf32>
    %cst_39 = arith.constant dense<0xFF800000> : vector<8xf32>
    %71 = vector.multi_reduction <maximumf>, %70, %cst_39 [1] : vector<8x8xf32> to vector<8xf32>
    %72 = vector.shape_cast %71 : vector<8xf32> to vector<8x1xf32>
    %73 = vector.broadcast %72 : vector<8x1xf32> to vector<8x8xf32>
    %74 = arith.subf %70, %73 : vector<8x8xf32>
    %75 = math.exp %74 : vector<8x8xf32>
    %cst_40 = arith.constant dense<0.000000e+00> : vector<8xf32>
    %76 = vector.multi_reduction <add>, %75, %cst_40 [1] : vector<8x8xf32> to vector<8xf32>
    %77 = vector.shape_cast %76 : vector<8xf32> to vector<8x1xf32>
    %78 = vector.broadcast %77 : vector<8x1xf32> to vector<8x8xf32>
    %79 = arith.divf %75, %78 : vector<8x8xf32>
    %c0_41 = arith.constant 0 : index
    %c2 = arith.constant 2 : index
    %c0_42 = arith.constant 0 : index
    %c0_43 = arith.constant 0 : index
    %80 = vector.load %arg11[%c0_41, %c2, %c0_42, %c0_43] : memref<1x4x8x8xf32, #tpu.memory_space<vmem>>, vector<1x1x8x8xf32>
    %81 = vector.shape_cast %80 : vector<1x1x8x8xf32> to vector<8x8xf32>
    %82 = vector.shape_cast %79 : vector<8x8xf32> to vector<1x1x8x8xf32>
    tpu.vector_store %arg11[%c0_41, %c2, %c0_42, %c0_43], %82 {strides = array<i32>} : memref<1x4x8x8xf32, #tpu.memory_space<vmem>>, vector<1x1x8x8xf32>,
    %83 = arith.truncf %79 : vector<8x8xf32> to vector<8x8xbf16>
    %cst_44 = arith.constant dense<0.000000e+00> : vector<8x8xf32>
    %84 = tpu.matmul %83, %69, %cst_44 {dimension_numbers = #tpu.dot_dimension_numbers<[1], [0], [0], [1], [0, 0, 1, 1], [], []>} : vector<8x8xbf16>, vector<8x8xbf16>, vector<8x8xf32> -> vector<8x8xf32>
    %85 = arith.truncf %84 : vector<8x8xf32> to vector<8x8xbf16>
    %c0_45 = arith.constant 0 : index
    %c16_46 = arith.constant 16 : index
    %86 = vector.load %arg13[%c0_45, %c16_46] : memref<8x32xbf16, #tpu.memory_space<vmem>>, vector<8x8xbf16>
    tpu.vector_store %arg13[%c0_45, %c16_46], %85 {strides = array<i32>} : memref<8x32xbf16, #tpu.memory_space<vmem>>, vector<8x8xbf16>,
    %87 = vector.extract_strided_slice %22 {offsets = [0, 24], sizes = [8, 8], strides = [1, 1]} : vector<8x32xbf16> to vector<8x8xbf16>
    %88 = vector.extract_strided_slice %24 {offsets = [0, 24], sizes = [8, 8], strides = [1, 1]} : vector<8x32xbf16> to vector<8x8xbf16>
    %89 = vector.extract_strided_slice %26 {offsets = [0, 24], sizes = [8, 8], strides = [1, 1]} : vector<8x32xbf16> to vector<8x8xbf16>
    %cst_47 = arith.constant dense<0.000000e+00> : vector<8x8xf32>
    %90 = tpu.matmul %87, %88, %cst_47 {dimension_numbers = #tpu.dot_dimension_numbers<[1], [1], [0], [0], [0, 0, 1, 0], [], []>} : vector<8x8xbf16>, vector<8x8xbf16>, vector<8x8xf32> -> vector<8x8xf32>
    %cst_48 = arith.constant dense<0xFF800000> : vector<8xf32>
    %91 = vector.multi_reduction <maximumf>, %90, %cst_48 [1] : vector<8x8xf32> to vector<8xf32>
    %92 = vector.shape_cast %91 : vector<8xf32> to vector<8x1xf32>
    %93 = vector.broadcast %92 : vector<8x1xf32> to vector<8x8xf32>
    %94 = arith.subf %90, %93 : vector<8x8xf32>
    %95 = math.exp %94 : vector<8x8xf32>
    %cst_49 = arith.constant dense<0.000000e+00> : vector<8xf32>
    %96 = vector.multi_reduction <add>, %95, %cst_49 [1] : vector<8x8xf32> to vector<8xf32>
    %97 = vector.shape_cast %96 : vector<8xf32> to vector<8x1xf32>
    %98 = vector.broadcast %97 : vector<8x1xf32> to vector<8x8xf32>
    %99 = arith.divf %95, %98 : vector<8x8xf32>
    %c0_50 = arith.constant 0 : index
    %c3 = arith.constant 3 : index
    %c0_51 = arith.constant 0 : index
    %c0_52 = arith.constant 0 : index
    %100 = vector.load %arg11[%c0_50, %c3, %c0_51, %c0_52] : memref<1x4x8x8xf32, #tpu.memory_space<vmem>>, vector<1x1x8x8xf32>
    %101 = vector.shape_cast %100 : vector<1x1x8x8xf32> to vector<8x8xf32>
    %102 = vector.shape_cast %99 : vector<8x8xf32> to vector<1x1x8x8xf32>
    tpu.vector_store %arg11[%c0_50, %c3, %c0_51, %c0_52], %102 {strides = array<i32>} : memref<1x4x8x8xf32, #tpu.memory_space<vmem>>, vector<1x1x8x8xf32>,
    %103 = arith.truncf %99 : vector<8x8xf32> to vector<8x8xbf16>
    %cst_53 = arith.constant dense<0.000000e+00> : vector<8x8xf32>
    %104 = tpu.matmul %103, %89, %cst_53 {dimension_numbers = #tpu.dot_dimension_numbers<[1], [0], [0], [1], [0, 0, 1, 1], [], []>} : vector<8x8xbf16>, vector<8x8xbf16>, vector<8x8xf32> -> vector<8x8xf32>
    %105 = arith.truncf %104 : vector<8x8xf32> to vector<8x8xbf16>
    %c0_54 = arith.constant 0 : index
    %c24 = arith.constant 24 : index
    %106 = vector.load %arg13[%c0_54, %c24] : memref<8x32xbf16, #tpu.memory_space<vmem>>, vector<8x8xbf16>
    tpu.vector_store %arg13[%c0_54, %c24], %105 {strides = array<i32>} : memref<8x32xbf16, #tpu.memory_space<vmem>>, vector<8x8xbf16>,
    %c0_55 = arith.constant 0 : index
    %c0_56 = arith.constant 0 : index
    %107 = vector.load %arg13[%c0_55, %c0_56] : memref<8x32xbf16, #tpu.memory_space<vmem>>, vector<8x32xbf16>
    %c0_57 = arith.constant 0 : index
    %c0_58 = arith.constant 0 : index
    %108 = vector.load %arg6[%c0_57, %c0_58] : memref<32x32xbf16, #tpu.memory_space<vmem>>, vector<32x32xbf16>
    %cst_59 = arith.constant dense<0.000000e+00> : vector<8x32xf32>
    %109 = tpu.matmul %107, %108, %cst_59 {dimension_numbers = #tpu.dot_dimension_numbers<[1], [0], [0], [1], [0, 0, 1, 1], [], []>} : vector<8x32xbf16>, vector<32x32xbf16>, vector<8x32xf32> -> vector<8x32xf32>
    %c0_60 = arith.constant 0 : index
    %c0_61 = arith.constant 0 : index
    %110 = vector.load %arg7[%c0_60, %c0_61] : memref<1x32xf32, #tpu.memory_space<vmem>>, vector<1x32xf32>
    %111 = vector.broadcast %110 : vector<1x32xf32> to vector<8x32xf32>
    %112 = arith.addf %109, %111 : vector<8x32xf32>
    %c0_62 = arith.constant 0 : index
    %c0_63 = arith.constant 0 : index
    %c0_64 = arith.constant 0 : index
    %113 = vector.load %arg1[%c0_62, %c0_63, %c0_64] : memref<1x8x32xf32, #tpu.memory_space<vmem>>, vector<1x8x32xf32>
    %114 = vector.shape_cast %113 : vector<1x8x32xf32> to vector<8x32xf32>
    %115 = arith.addf %114, %112 : vector<8x32xf32>
    %cst_65 = arith.constant dense<0.000000e+00> : vector<8xf32>
    %116 = vector.multi_reduction <add>, %115, %cst_65 [1] : vector<8x32xf32> to vector<8xf32>
    %117 = vector.shape_cast %116 : vector<8xf32> to vector<8x1xf32>
    %cst_66 = arith.constant 3.200000e+01 : f32
    %118 = vector.broadcast %cst_66 : f32 to vector<8x1xf32>
    %119 = arith.divf %117, %118 : vector<8x1xf32>
    %120 = vector.broadcast %119 : vector<8x1xf32> to vector<8x32xf32>
    %121 = arith.subf %115, %120 : vector<8x32xf32>
    %122 = arith.mulf %121, %121 : vector<8x32xf32>
    %cst_67 = arith.constant dense<0.000000e+00> : vector<8xf32>
    %123 = vector.multi_reduction <add>, %122, %cst_67 [1] : vector<8x32xf32> to vector<8xf32>
    %124 = vector.shape_cast %123 : vector<8xf32> to vector<8x1xf32>
    %cst_68 = arith.constant 3.200000e+01 : f32
    %125 = vector.broadcast %cst_68 : f32 to vector<8x1xf32>
    %126 = arith.divf %124, %125 : vector<8x1xf32>
    %cst_69 = arith.constant 9.99999997E-7 : f32
    %127 = vector.broadcast %cst_69 : f32 to vector<8x1xf32>
    %128 = arith.addf %126, %127 : vector<8x1xf32>
    %129 = math.rsqrt %128 : vector<8x1xf32>
    %130 = vector.broadcast %129 : vector<8x1xf32> to vector<8x32xf32>
    %131 = arith.mulf %121, %130 : vector<8x32xf32>
    %c0_70 = arith.constant 0 : index
    %c0_71 = arith.constant 0 : index
    %132 = vector.load %arg8[%c0_70, %c0_71] : memref<1x32xf32, #tpu.memory_space<vmem>>, vector<1x32xf32>
    %133 = vector.broadcast %132 : vector<1x32xf32> to vector<8x32xf32>
    %134 = arith.mulf %131, %133 : vector<8x32xf32>
    %c0_72 = arith.constant 0 : index
    %c0_73 = arith.constant 0 : index
    %135 = vector.load %arg9[%c0_72, %c0_73] : memref<1x32xf32, #tpu.memory_space<vmem>>, vector<1x32xf32>
    %136 = vector.broadcast %135 : vector<1x32xf32> to vector<8x32xf32>
    %137 = arith.addf %134, %136 : vector<8x32xf32>
    %c0_74 = arith.constant 0 : index
    %c0_75 = arith.constant 0 : index
    %c0_76 = arith.constant 0 : index
    %138 = vector.load %arg10[%c0_74, %c0_75, %c0_76] : memref<1x8x32xf32, #tpu.memory_space<vmem>>, vector<1x8x32xf32>
    %139 = vector.shape_cast %138 : vector<1x8x32xf32> to vector<8x32xf32>
    %140 = vector.shape_cast %137 : vector<8x32xf32> to vector<1x8x32xf32>
    tpu.vector_store %arg10[%c0_74, %c0_75, %c0_76], %140 {strides = array<i32>} : memref<1x8x32xf32, #tpu.memory_space<vmem>>, vector<1x8x32xf32>,
    return
  }
  func.func @transform_0(%arg0: i32) -> (i32, i32, i32) {
    %c0_i32 = arith.constant 0 : i32
    %c0_i32_0 = arith.constant 0 : i32
    %c0_i32_1 = arith.constant 0 : i32
    return %arg0, %c0_i32, %c0_i32_0 : i32, i32, i32
  }
  func.func @transform_1(%arg0: i32) -> (i32, i32, i32) {
    %c0_i32 = arith.constant 0 : i32
    %c0_i32_0 = arith.constant 0 : i32
    %c0_i32_1 = arith.constant 0 : i32
    return %arg0, %c0_i32, %c0_i32_0 : i32, i32, i32
  }
  func.func @transform_2(%arg0: i32) -> (i32, i32, i32) {
    %c0_i32 = arith.constant 0 : i32
    %c0_i32_0 = arith.constant 0 : i32
    %c0_i32_1 = arith.constant 0 : i32
    return %arg0, %c0_i32, %c0_i32_0 : i32, i32, i32
  }
  func.func @transform_3(%arg0: i32) -> (i32, i32) {
    %c0_i32 = arith.constant 0 : i32
    %c0_i32_0 = arith.constant 0 : i32
    %c0_i32_1 = arith.constant 0 : i32
    return %c0_i32, %c0_i32_0 : i32, i32
  }
  func.func @transform_4(%arg0: i32) -> (i32, i32) {
    %c0_i32 = arith.constant 0 : i32
    %c0_i32_0 = arith.constant 0 : i32
    %c0_i32_1 = arith.constant 0 : i32
    return %c0_i32, %c0_i32_0 : i32, i32
  }
  func.func @transform_5(%arg0: i32) -> (i32, i32) {
    %c0_i32 = arith.constant 0 : i32
    %c0_i32_0 = arith.constant 0 : i32
    %c0_i32_1 = arith.constant 0 : i32
    return %c0_i32, %c0_i32_0 : i32, i32
  }
  func.func @transform_6(%arg0: i32) -> (i32, i32) {
    %c0_i32 = arith.constant 0 : i32
    %c0_i32_0 = arith.constant 0 : i32
    %c0_i32_1 = arith.constant 0 : i32
    return %c0_i32, %c0_i32_0 : i32, i32
  }
  func.func @transform_7(%arg0: i32) -> (i32, i32) {
    %c0_i32 = arith.constant 0 : i32
    %c0_i32_0 = arith.constant 0 : i32
    %c0_i32_1 = arith.constant 0 : i32
    return %c0_i32, %c0_i32_0 : i32, i32
  }
  func.func @transform_8(%arg0: i32) -> (i32, i32) {
    %c0_i32 = arith.constant 0 : i32
    %c0_i32_0 = arith.constant 0 : i32
    %c0_i32_1 = arith.constant 0 : i32
    return %c0_i32, %c0_i32_0 : i32, i32
  }
  func.func @transform_9(%arg0: i32) -> (i32, i32, i32) {
    %c0_i32 = arith.constant 0 : i32
    %c0_i32_0 = arith.constant 0 : i32
    %c0_i32_1 = arith.constant 0 : i32
    return %arg0, %c0_i32, %c0_i32_0 : i32, i32, i32
  }
  func.func @transform_10(%arg0: i32) -> (i32, i32, i32, i32) {
    %c0_i32 = arith.constant 0 : i32
    %c0_i32_0 = arith.constant 0 : i32
    %c0_i32_1 = arith.constant 0 : i32
    %c0_i32_2 = arith.constant 0 : i32
    return %arg0, %c0_i32, %c0_i32_0, %c0_i32_1 : i32, i32, i32, i32
  }
}

</mosaic_0001>

<llo_original>
// kernel: tpu_custom_call.1
$region0: #{tpu_custom_call.1}
  #allocation0 [shape = 'u32[]', space=smem, size = 0x4, offset = 0x4, fixed_abs, tag = 'smem constant byte address 0x4 - core index']
  #allocation1 [shape = 'u32[144,128]{1,0:T(1,128)}', space=vmem, size = 0x12000, scoped, tag = 'internal scratch']
  #allocation2 [shape = 'bf16[48,32]{1,0:T(8,128)(2,1)}', space=vmem, size = 0x3000, scoped, tag = 'scratch operand']
  #allocation3 [shape = 'bf16[8,32]{1,0:T(8,128)(2,1)}', space=vmem, size = 0x800, scoped, tag = 'scratch operand']
  %s0 = inlined_call_operand.hbm [shape: f32[2,8,32], index: 0, kind: input, shape index: {}]
  %s1 = inlined_call_operand.hbm [shape: bf16[2,8,32], index: 1, kind: input, shape index: {}]
  %s2 = inlined_call_operand.hbm [shape: bf16[2,8,32], index: 2, kind: input, shape index: {}]
  %s3 = inlined_call_operand.hbm [shape: bf16[32,32], index: 3, kind: input, shape index: {}]
  %s4 = inlined_call_operand.vmem [shape: f32[1,32], index: 4, kind: input, shape index: {}]
  %s5 = inlined_call_operand.hbm [shape: bf16[32,32], index: 5, kind: input, shape index: {}]
  %s6 = inlined_call_operand.vmem [shape: f32[1,32], index: 6, kind: input, shape index: {}]
  %s7 = inlined_call_operand.vmem [shape: f32[1,32], index: 7, kind: input, shape index: {}]
  %s8 = inlined_call_operand.vmem [shape: f32[1,32], index: 8, kind: input, shape index: {}]
  %s9 = inlined_call_operand.hbm [shape: f32[2,8,32], index: 9, kind: output, shape index: {0}]
  %s10 = inlined_call_operand.hbm [shape: f32[2,4,8,8], index: 10, kind: output, shape index: {1}]
  %11 = xla_tuple %s9, %s10
  %s12 = sld [smem:[#allocation0]]
  $region101: #{tpu_custom_call.1} parent=0
    _
  %s14 = ssub.s32 1, %s12
  %s15 = scalar_select 0, %s14, %s12
  $region1: #{tpu_custom_call.1} parent=0
    #allocation4 [shape = 'u8[8192]{0}', space=vmem, size = 0x2000, scoped, tag = 'input window, operand 0']
    #allocation5 [shape = 's32[2]{0}', space=sflag, size = 0x8, scoped, tag = 'scoped memory for tpu_custom_call.1']
    #allocation6 [shape = 's32[2]{0}', space=sflag, size = 0x8, scoped, tag = 'scoped memory for tpu_custom_call.1']
    #allocation7 [shape = 'u8[4096]{0}', space=vmem, size = 0x1000, scoped, tag = 'input window, operand 1']
    #allocation8 [shape = 's32[2]{0}', space=sflag, size = 0x8, scoped, tag = 'scoped memory for tpu_custom_call.1']
    #allocation9 [shape = 'u8[4096]{0}', space=vmem, size = 0x1000, scoped, tag = 'input window, operand 2']
    #allocation10 [shape = 'u8[8192]{0}', space=vmem, size = 0x2000, scoped, tag = 'input window, operand 3, single buffered']
    #allocation11 [shape = 's32[1]{0}', space=sflag, size = 0x4, scoped, tag = 'scoped memory for tpu_custom_call.1']
    #allocation12 [shape = 'u8[8192]{0}', space=vmem, size = 0x2000, scoped, tag = 'input window, operand 5, single buffered']
    #allocation13 [shape = 'u8[8192]{0}', space=vmem, size = 0x2000, scoped, tag = 'output window, operand 0']
    #allocation14 [shape = 'u8[32768]{0}', space=vmem, size = 0x8000, scoped, tag = 'output window, operand 1']
    #allocation15 [shape = 's32[2]{0}', space=sflag, size = 0x8, scoped, tag = 'scoped memory for tpu_custom_call.1']
    %16 = vsyncpa [#allocation5], 0
    %s17 = scalar_lea.sflag [#allocation5], 1
    %18 = vsyncpa %s17, 0
    %19 = vsyncpa [#allocation8], 0
    %s20 = scalar_lea.sflag [#allocation8], 1
    %21 = vsyncpa %s20, 0
    %22 = vsyncpa [#allocation11], 0
    %23 = vsyncpa [#allocation6], 0
    %s24 = scalar_lea.sflag [#allocation6], 1
    %25 = vsyncpa %s24, 0
    %26 = vsyncpa [#allocation15], 0
    %s27 = scalar_lea.sflag [#allocation15], 1
    %28 = vsyncpa %s27, 0
    loop: start=0, step=1, limit=4
    $region2: #{tpu_custom_call.1} parent=1 // loop_pre_header
      _
    $region3: #{tpu_custom_call.1} parent=1 // loop_header
      %s30 = sphi 0, %s34
      %p31 = scmp.ge.s32.totalorder %s30, 4
      %s40 = sphi 0, %s42
      %s43 = sphi 0, %s40
      %s44 = sphi 0, %s43
      %s60 = sphi 0, %s44
      %s66 = sphi 0, %s68
      %s69 = sphi 0, %s66
      %s70 = sphi 0, %s69
      %s86 = sphi 0, %s70
      %s92 = sphi 0, %s94
      %s95 = sphi 0, %s92
      %s96 = sphi 0, %s95
      %s112 = sphi 0, %s96
      %s116 = sphi 0, %s116
      %s118 = sphi 0, %s116
      %s119 = sphi 0, %s118
      %s133 = sphi 0, %s119
      %s137 = sphi 0, %s137
      %s139 = sphi 0, %s137
      %s140 = sphi 0, %s139
      %s154 = sphi 0, %s140
      %s158 = sphi 0, %s158
      %s160 = sphi 0, %s158
      %s161 = sphi 0, %s160
      %s175 = sphi 0, %s161
      %s179 = sphi 0, %s179
      %s181 = sphi 0, %s179
      %s182 = sphi 0, %s181
      %s196 = sphi 0, %s182
      %s200 = sphi 0, %s200
      %s202 = sphi 0, %s200
      %s203 = sphi 0, %s202
      %s217 = sphi 0, %s203
      %s221 = sphi 0, %s221
      %s223 = sphi 0, %s221
      %s224 = sphi 0, %s223
      %s238 = sphi 0, %s224
      %s244 = sphi 0, %s246
      %s247 = sphi 0, %s244
      %s248 = sphi 0, %s247
      %s264 = sphi 0, %s248
      %s270 = sphi 0, %s272
      %s273 = sphi 0, %s270
      %s274 = sphi 0, %s273
      %s290 = sphi 0, %s274
    $region4: #{tpu_custom_call.1} parent=1 // loop_header_branch
      %33 = sbr.rel (%p31) target = $region8
    $region5: #{tpu_custom_call.1} parent=1 // loop_body
      %s35 = ssub.s32 %s30, 1
      %s36 = ssub.s32 %s30, 2
      %s37 = sadd.s32 %s30, 1
      %s38 = ssub.s32 %s30, %s37
      %p39 = scmp.eq.s32.totalorder %s38, 0
      %s41 = sadd.s32 %s40, 1
      %s42 = scalar_select %p39, %s40, %s41
      %p45 = pneg %p39
      %p46 = scmp.eq.s32.totalorder %s30, 1
      %p47 = por %p45, %p46
      %p48 = scmp.ne.s32.totalorder %s40, %s43
      %p49 = scmp.eq.s32.totalorder %s30, 0
      %p50 = por %p48, %p49
      %p51 = scmp.ne.s32.totalorder %s40, %s43
      %p52 = scmp.eq.s32.totalorder %s35, 1
      %p53 = por %p51, %p52
      %p54 = scmp.ne.s32.totalorder %s43, %s44
      %p55 = scmp.eq.s32.totalorder %s35, 0
      %p56 = por %p54, %p55
      %p57 = scmp.ne.s32.totalorder %s43, %s44
      %p58 = scmp.eq.s32.totalorder %s36, 1
      %p59 = por %p57, %p58
      %p61 = scmp.ne.s32.totalorder %s44, %s60
      %p62 = scmp.eq.s32.totalorder %s36, 0
      %p63 = por %p61, %p62
      %s64 = ssub.s32 %s30, %s37
      %p65 = scmp.eq.s32.totalorder %s64, 0
      %s67 = sadd.s32 %s66, 1
      %s68 = scalar_select %p65, %s66, %s67
      %p71 = pneg %p65
      %p72 = scmp.eq.s32.totalorder %s30, 1
      %p73 = por %p71, %p72
      %p74 = scmp.ne.s32.totalorder %s66, %s69
      %p75 = scmp.eq.s32.totalorder %s30, 0
      %p76 = por %p74, %p75
      %p77 = scmp.ne.s32.totalorder %s66, %s69
      %p78 = scmp.eq.s32.totalorder %s35, 1
      %p79 = por %p77, %p78
      %p80 = scmp.ne.s32.totalorder %s69, %s70
      %p81 = scmp.eq.s32.totalorder %s35, 0
      %p82 = por %p80, %p81
      %p83 = scmp.ne.s32.totalorder %s69, %s70
      %p84 = scmp.eq.s32.totalorder %s36, 1
      %p85 = por %p83, %p84
      %p87 = scmp.ne.s32.totalorder %s70, %s86
      %p88 = scmp.eq.s32.totalorder %s36, 0
      %p89 = por %p87, %p88
      %s90 = ssub.s32 %s30, %s37
      %p91 = scmp.eq.s32.totalorder %s90, 0
      %s93 = sadd.s32 %s92, 1
      %s94 = scalar_select %p91, %s92, %s93
      %p97 = pneg %p91
      %p98 = scmp.eq.s32.totalorder %s30, 1
      %p99 = por %p97, %p98
      %p100 = scmp.ne.s32.totalorder %s92, %s95
      %p101 = scmp.eq.s32.totalorder %s30, 0
      %p102 = por %p100, %p101
      %p103 = scmp.ne.s32.totalorder %s92, %s95
      %p104 = scmp.eq.s32.totalorder %s35, 1
      %p105 = por %p103, %p104
      %p106 = scmp.ne.s32.totalorder %s95, %s96
      %p107 = scmp.eq.s32.totalorder %s35, 0
      %p108 = por %p106, %p107
      %p109 = scmp.ne.s32.totalorder %s95, %s96
      %p110 = scmp.eq.s32.totalorder %s36, 1
      %p111 = por %p109, %p110
      %p113 = scmp.ne.s32.totalorder %s96, %s112
      %p114 = scmp.eq.s32.totalorder %s36, 0
      %p115 = por %p113, %p114
      %s117 = sadd.s32 %s116, 1
      %p120 = scmp.eq.s32.totalorder %s30, 1
      %p121 = scmp.ne.s32.totalorder %s116, %s118
      %p122 = scmp.eq.s32.totalorder %s30, 0
      %p123 = por %p121, %p122
      %p124 = scmp.ne.s32.totalorder %s116, %s118
      %p125 = scmp.eq.s32.totalorder %s35, 1
      %p126 = por %p124, %p125
      %p127 = scmp.ne.s32.totalorder %s118, %s119
      %p128 = scmp.eq.s32.totalorder %s35, 0
      %p129 = por %p127, %p128
      %p130 = scmp.ne.s32.totalorder %s118, %s119
      %p131 = scmp.eq.s32.totalorder %s36, 1
      %p132 = por %p130, %p131
      %p134 = scmp.ne.s32.totalorder %s119, %s133
      %p135 = scmp.eq.s32.totalorder %s36, 0
      %p136 = por %p134, %p135
      %s138 = sadd.s32 %s137, 1
      %p141 = scmp.eq.s32.totalorder %s30, 1
      %p142 = scmp.ne.s32.totalorder %s137, %s139
      %p143 = scmp.eq.s32.totalorder %s30, 0
      %p144 = por %p142, %p143
      %p145 = scmp.ne.s32.totalorder %s137, %s139
      %p146 = scmp.eq.s32.totalorder %s35, 1
      %p147 = por %p145, %p146
      %p148 = scmp.ne.s32.totalorder %s139, %s140
      %p149 = scmp.eq.s32.totalorder %s35, 0
      %p150 = por %p148, %p149
      %p151 = scmp.ne.s32.totalorder %s139, %s140
      %p152 = scmp.eq.s32.totalorder %s36, 1
      %p153 = por %p151, %p152
      %p155 = scmp.ne.s32.totalorder %s140, %s154
      %p156 = scmp.eq.s32.totalorder %s36, 0
      %p157 = por %p155, %p156
      %s159 = sadd.s32 %s158, 1
      %p162 = scmp.eq.s32.totalorder %s30, 1
      %p163 = scmp.ne.s32.totalorder %s158, %s160
      %p164 = scmp.eq.s32.totalorder %s30, 0
      %p165 = por %p163, %p164
      %p166 = scmp.ne.s32.totalorder %s158, %s160
      %p167 = scmp.eq.s32.totalorder %s35, 1
      %p168 = por %p166, %p167
      %p169 = scmp.ne.s32.totalorder %s160, %s161
      %p170 = scmp.eq.s32.totalorder %s35, 0
      %p171 = por %p169, %p170
      %p172 = scmp.ne.s32.totalorder %s160, %s161
      %p173 = scmp.eq.s32.totalorder %s36, 1
      %p174 = por %p172, %p173
      %p176 = scmp.ne.s32.totalorder %s161, %s175
      %p177 = scmp.eq.s32.totalorder %s36, 0
      %p178 = por %p176, %p177
      %s180 = sadd.s32 %s179, 1
      %p183 = scmp.eq.s32.totalorder %s30, 1
      %p184 = scmp.ne.s32.totalorder %s179, %s181
      %p185 = scmp.eq.s32.totalorder %s30, 0
      %p186 = por %p184, %p185
      %p187 = scmp.ne.s32.totalorder %s179, %s181
      %p188 = scmp.eq.s32.totalorder %s35, 1
      %p189 = por %p187, %p188
      %p190 = scmp.ne.s32.totalorder %s181, %s182
      %p191 = scmp.eq.s32.totalorder %s35, 0
      %p192 = por %p190, %p191
      %p193 = scmp.ne.s32.totalorder %s181, %s182
      %p194 = scmp.eq.s32.totalorder %s36, 1
      %p195 = por %p193, %p194
      %p197 = scmp.ne.s32.totalorder %s182, %s196
      %p198 = scmp.eq.s32.totalorder %s36, 0
      %p199 = por %p197, %p198
      %s201 = sadd.s32 %s200, 1
      %p204 = scmp.eq.s32.totalorder %s30, 1
      %p205 = scmp.ne.s32.totalorder %s200, %s202
      %p206 = scmp.eq.s32.totalorder %s30, 0
      %p207 = por %p205, %p206
      %p208 = scmp.ne.s32.totalorder %s200, %s202
      %p209 = scmp.eq.s32.totalorder %s35, 1
      %p210 = por %p208, %p209
      %p211 = scmp.ne.s32.totalorder %s202, %s203
      %p212 = scmp.eq.s32.totalorder %s35, 0
      %p213 = por %p211, %p212
      %p214 = scmp.ne.s32.totalorder %s202, %s203
      %p215 = scmp.eq.s32.totalorder %s36, 1
      %p216 = por %p214, %p215
      %p218 = scmp.ne.s32.totalorder %s203, %s217
      %p219 = scmp.eq.s32.totalorder %s36, 0
      %p220 = por %p218, %p219
      %s222 = sadd.s32 %s221, 1
      %p225 = scmp.eq.s32.totalorder %s30, 1
      %p226 = scmp.ne.s32.totalorder %s221, %s223
      %p227 = scmp.eq.s32.totalorder %s30, 0
      %p228 = por %p226, %p227
      %p229 = scmp.ne.s32.totalorder %s221, %s223
      %p230 = scmp.eq.s32.totalorder %s35, 1
      %p231 = por %p229, %p230
      %p232 = scmp.ne.s32.totalorder %s223, %s224
      %p233 = scmp.eq.s32.totalorder %s35, 0
      %p234 = por %p232, %p233
      %p235 = scmp.ne.s32.totalorder %s223, %s224
      %p236 = scmp.eq.s32.totalorder %s36, 1
      %p237 = por %p235, %p236
      %p239 = scmp.ne.s32.totalorder %s224, %s238
      %p240 = scmp.eq.s32.totalorder %s36, 0
      %p241 = por %p239, %p240
      %s242 = ssub.s32 %s30, %s37
      %p243 = scmp.eq.s32.totalorder %s242, 0
      %s245 = sadd.s32 %s244, 1
      %s246 = scalar_select %p243, %s244, %s245
      %p249 = pneg %p243
      %p250 = scmp.eq.s32.totalorder %s30, 1
      %p251 = por %p249, %p250
      %p252 = scmp.ne.s32.totalorder %s244, %s247
      %p253 = scmp.eq.s32.totalorder %s30, 0
      %p254 = por %p252, %p253
      %p255 = scmp.ne.s32.totalorder %s244, %s247
      %p256 = scmp.eq.s32.totalorder %s35, 1
      %p257 = por %p255, %p256
      %p258 = scmp.ne.s32.totalorder %s247, %s248
      %p259 = scmp.eq.s32.totalorder %s35, 0
      %p260 = por %p258, %p259
      %p261 = scmp.ne.s32.totalorder %s247, %s248
      %p262 = scmp.eq.s32.totalorder %s36, 1
      %p263 = por %p261, %p262
      %p265 = scmp.ne.s32.totalorder %s248, %s264
      %p266 = scmp.eq.s32.totalorder %s36, 0
      %p267 = por %p265, %p266
      %s268 = ssub.s32 %s30, %s37
      %p269 = scmp.eq.s32.totalorder %s268, 0
      %s271 = sadd.s32 %s270, 1
      %s272 = scalar_select %p269, %s270, %s271
      %p275 = pneg %p269
      %p276 = scmp.eq.s32.totalorder %s30, 1
      %p277 = por %p275, %p276
      %p278 = scmp.ne.s32.totalorder %s270, %s273
      %p279 = scmp.eq.s32.totalorder %s30, 0
      %p280 = por %p278, %p279
      %p281 = scmp.ne.s32.totalorder %s270, %s273
      %p282 = scmp.eq.s32.totalorder %s35, 1
      %p283 = por %p281, %p282
      %p284 = scmp.ne.s32.totalorder %s273, %s274
      %p285 = scmp.eq.s32.totalorder %s35, 0
      %p286 = por %p284, %p285
      %p287 = scmp.ne.s32.totalorder %s273, %s274
      %p288 = scmp.eq.s32.totalorder %s36, 1
      %p289 = por %p287, %p288
      %p291 = scmp.ne.s32.totalorder %s274, %s290
      %p292 = scmp.eq.s32.totalorder %s36, 0
      %p293 = por %p291, %p292
      %p294 = scmp.le.s32.totalorder 1, %s30
      %p295 = scmp.lt.s32.totalorder %s30, 3
      %p296 = pnand %p294, %p295
      %p297 = pneg %p296
      // Predicated region
      $region9: #{tpu_custom_call.1} parent=5 // pred_check
        _
      $region10: #{tpu_custom_call.1} parent=5 // pred_check_branch
        %299 = sbr.rel (%p296) target = $region12
      $region11: #{tpu_custom_call.1} parent=5 // pred_region
        %s300 = ssub.s32 %s30, 1
        // Predicated region
        $region13: #{tpu_custom_call.1} parent=11 // pred_check
          %p301 = pneg %p129
        $region14: #{tpu_custom_call.1} parent=11 // pred_check_branch
          %303 = sbr.rel (%p301) target = $region16
        $region15: #{tpu_custom_call.1} parent=11 // pred_region
          %s305 = ssub.s32 256, 256
          %306 = vsyncadd [#allocation11], %s305
          %s307 = sshll.u32 [#allocation10], 4
          %s308 = int_to_ptr.vmem [resolvable:$true] %s307
          %313 = dma.hbm_to_vmem [thread:$0]  %s3, 256, %s308, [#allocation11], 64, 64, 4
        $region16: #{tpu_custom_call.1} parent=11 // pred_fallthru
          _
        // Predicated region
        $region17: #{tpu_custom_call.1} parent=11 // pred_check
          %p314 = pneg %p150
        $region18: #{tpu_custom_call.1} parent=11 // pred_check_branch
          %316 = sbr.rel (%p314) target = $region20
        $region19: #{tpu_custom_call.1} parent=11 // pred_region
          _
        $region20: #{tpu_custom_call.1} parent=11 // pred_fallthru
          _
        // Predicated region
        $region21: #{tpu_custom_call.1} parent=11 // pred_check
          %p317 = pneg %p171
        $region22: #{tpu_custom_call.1} parent=11 // pred_check_branch
          %319 = sbr.rel (%p317) target = $region24
        $region23: #{tpu_custom_call.1} parent=11 // pred_region
          %s321 = ssub.s32 256, 256
          %322 = vsyncadd [#allocation11], %s321
          %s323 = sshll.u32 [#allocation12], 4
          %s324 = int_to_ptr.vmem [resolvable:$true] %s323
          %329 = dma.hbm_to_vmem [thread:$0]  %s5, 256, %s324, [#allocation11], 64, 64, 4
        $region24: #{tpu_custom_call.1} parent=11 // pred_fallthru
          _
        // Predicated region
        $region25: #{tpu_custom_call.1} parent=11 // pred_check
          %p330 = pneg %p192
        $region26: #{tpu_custom_call.1} parent=11 // pred_check_branch
          %332 = sbr.rel (%p330) target = $region28
        $region27: #{tpu_custom_call.1} parent=11 // pred_region
          _
        $region28: #{tpu_custom_call.1} parent=11 // pred_fallthru
          _
        // Predicated region
        $region29: #{tpu_custom_call.1} parent=11 // pred_check
          %p333 = pneg %p213
        $region30: #{tpu_custom_call.1} parent=11 // pred_check_branch
          %335 = sbr.rel (%p333) target = $region32
        $region31: #{tpu_custom_call.1} parent=11 // pred_region
          _
        $region32: #{tpu_custom_call.1} parent=11 // pred_fallthru
          _
        // Predicated region
        $region33: #{tpu_custom_call.1} parent=11 // pred_check
          %p336 = pneg %p234
        $region34: #{tpu_custom_call.1} parent=11 // pred_check_branch
          %338 = sbr.rel (%p336) target = $region36
        $region35: #{tpu_custom_call.1} parent=11 // pred_region
          _
        $region36: #{tpu_custom_call.1} parent=11 // pred_fallthru
          _
      $region12: #{tpu_custom_call.1} parent=5 // pred_fallthru
        _
      %p339 = scmp.lt.s32.totalorder %s30, 2
      // Predicated region
      $region37: #{tpu_custom_call.1} parent=5 // pred_check
        %p340 = pneg %p339
      $region38: #{tpu_custom_call.1} parent=5 // pred_check_branch
        %342 = sbr.rel (%p340) target = $region40
      $region39: #{tpu_custom_call.1} parent=5 // pred_region
        // Predicated region
        $region41: #{tpu_custom_call.1} parent=39 // pred_check
          %p343 = pneg %p50
        $region42: #{tpu_custom_call.1} parent=39 // pred_check_branch
          %345 = sbr.rel (%p343) target = $region44
        $region43: #{tpu_custom_call.1} parent=39 // pred_region
          %s346 = sand.u32 %s40, 1
          %s347 = scalar_lea.sflag [#allocation5], %s346
          %s348 = sand.u32 %s40, 1
          %s349 = smul.addr %s348, 8
          %s350 = scalar_lea.vmem [#allocation4], %s349
          %s352 = ssub.s32 128, 128
          %353 = vsyncadd %s347, %s352
          %s354 = smul.addr %s30, 128
          %s355 = scalar_lea.hbm %s0, %s354
          %s357 = sshll.u32 %s350, 4
          %s358 = int_to_ptr.vmem [resolvable:$true] %s357
          %360 = dma.hbm_to_vmem [thread:$0]  %s355, 128, %s358, %s347
        $region44: #{tpu_custom_call.1} parent=39 // pred_fallthru
          _
        // Predicated region
        $region45: #{tpu_custom_call.1} parent=39 // pred_check
          %p361 = pneg %p76
        $region46: #{tpu_custom_call.1} parent=39 // pred_check_branch
          %363 = sbr.rel (%p361) target = $region48
        $region47: #{tpu_custom_call.1} parent=39 // pred_region
          %s364 = sand.u32 %s30, 1
          %s365 = scalar_lea.sflag [#allocation8], %s364
          %s366 = sand.u32 %s66, 1
          %s367 = smul.addr %s366, 4
          %s368 = scalar_lea.vmem [#allocation7], %s367
          %s370 = ssub.s32 64, 64
          %371 = vsyncadd %s365, %s370
          %s372 = smul.addr %s30, 64
          %s373 = scalar_lea.hbm %s1, %s372
          %s375 = sshll.u32 %s368, 4
          %s376 = int_to_ptr.vmem [resolvable:$true] %s375
          %378 = dma.hbm_to_vmem [thread:$0]  %s373, 64, %s376, %s365
        $region48: #{tpu_custom_call.1} parent=39 // pred_fallthru
          _
        // Predicated region
        $region49: #{tpu_custom_call.1} parent=39 // pred_check
          %p379 = pneg %p102
        $region50: #{tpu_custom_call.1} parent=39 // pred_check_branch
          %381 = sbr.rel (%p379) target = $region52
        $region51: #{tpu_custom_call.1} parent=39 // pred_region
          %s382 = sand.u32 %s30, 1
          %s383 = scalar_lea.sflag [#allocation8], %s382
          %s384 = sand.u32 %s92, 1
          %s385 = smul.addr %s384, 4
          %s386 = scalar_lea.vmem [#allocation9], %s385
          %s388 = ssub.s32 64, 64
          %389 = vsyncadd %s383, %s388
          %s390 = smul.addr %s30, 64
          %s391 = scalar_lea.hbm %s2, %s390
          %s393 = sshll.u32 %s386, 4
          %s394 = int_to_ptr.vmem [resolvable:$true] %s393
          %396 = dma.hbm_to_vmem [thread:$0]  %s391, 64, %s394, %s383
        $region52: #{tpu_custom_call.1} parent=39 // pred_fallthru
          _
      $region40: #{tpu_custom_call.1} parent=5 // pred_fallthru
        _
      %p397 = scmp.le.s32.totalorder 1, %s30
      %p398 = scmp.lt.s32.totalorder %s30, 3
      %p399 = pnand %p397, %p398
      %p400 = pneg %p399
      // Predicated region
      $region53: #{tpu_custom_call.1} parent=5 // pred_check
        _
      $region54: #{tpu_custom_call.1} parent=5 // pred_check_branch
        %402 = sbr.rel (%p399) target = $region56
      $region55: #{tpu_custom_call.1} parent=5 // pred_region
        %s403 = ssub.s32 %s30, 1
        %s404 = sand.u32 %s43, 1
        %s405 = scalar_lea.sflag [#allocation5], %s404
        %s406 = sand.u32 %s43, 1
        %s407 = smul.addr %s406, 8
        %s408 = scalar_lea.vmem [#allocation4], %s407
        // Predicated region
        $region57: #{tpu_custom_call.1} parent=55 // pred_check
          %p409 = pneg %p56
        $region58: #{tpu_custom_call.1} parent=55 // pred_check_branch
          %411 = sbr.rel (%p409) target = $region60
        $region59: #{tpu_custom_call.1} parent=55 // pred_region
          %412 = dma.done %s405, 128
        $region60: #{tpu_custom_call.1} parent=55 // pred_fallthru
          _
        %s413 = sand.u32 %s35, 1
        %s414 = scalar_lea.sflag [#allocation8], %s413
        %s415 = sand.u32 %s69, 1
        %s416 = smul.addr %s415, 4
        %s417 = scalar_lea.vmem [#allocation7], %s416
        // Predicated region
        $region61: #{tpu_custom_call.1} parent=55 // pred_check
          %p418 = pneg %p82
        $region62: #{tpu_custom_call.1} parent=55 // pred_check_branch
          %420 = sbr.rel (%p418) target = $region64
        $region63: #{tpu_custom_call.1} parent=55 // pred_region
          %421 = dma.done %s414, 64
        $region64: #{tpu_custom_call.1} parent=55 // pred_fallthru
          _
        %s422 = sand.u32 %s35, 1
        %s423 = scalar_lea.sflag [#allocation8], %s422
        %s424 = sand.u32 %s95, 1
        %s425 = smul.addr %s424, 4
        %s426 = scalar_lea.vmem [#allocation9], %s425
        // Predicated region
        $region65: #{tpu_custom_call.1} parent=55 // pred_check
          %p427 = pneg %p108
        $region66: #{tpu_custom_call.1} parent=55 // pred_check_branch
          %429 = sbr.rel (%p427) target = $region68
        $region67: #{tpu_custom_call.1} parent=55 // pred_region
          %430 = dma.done %s423, 64
        $region68: #{tpu_custom_call.1} parent=55 // pred_fallthru
          _
        // Predicated region
        $region69: #{tpu_custom_call.1} parent=55 // pred_check
          %p431 = pneg %p129
        $region70: #{tpu_custom_call.1} parent=55 // pred_check_branch
          %433 = sbr.rel (%p431) target = $region72
        $region71: #{tpu_custom_call.1} parent=55 // pred_region
          %434 = dma.done [#allocation11], 256
        $region72: #{tpu_custom_call.1} parent=55 // pred_fallthru
          _
        // Predicated region
        $region73: #{tpu_custom_call.1} parent=55 // pred_check
          %p435 = pneg %p171
        $region74: #{tpu_custom_call.1} parent=55 // pred_check_branch
          %437 = sbr.rel (%p435) target = $region76
        $region75: #{tpu_custom_call.1} parent=55 // pred_region
          %438 = dma.done [#allocation11], 256
        $region76: #{tpu_custom_call.1} parent=55 // pred_fallthru
          _
        %s439 = sand.u32 %s43, 1
        %s440 = scalar_lea.sflag [#allocation5], %s439
        %s441 = sand.u32 %s43, 1
        %s442 = smul.addr %s441, 8
        %s443 = scalar_lea.vmem [#allocation4], %s442
        %p444 = pneg %p56
        %p445 = pneg %p53
        %s446 = sand.u32 %s35, 1
        %s447 = scalar_lea.sflag [#allocation8], %s446
        %s448 = sand.u32 %s69, 1
        %s449 = smul.addr %s448, 4
        %s450 = scalar_lea.vmem [#allocation7], %s449
        %p451 = pneg %p82
        %p452 = pneg %p79
        %s453 = sand.u32 %s35, 1
        %s454 = scalar_lea.sflag [#allocation8], %s453
        %s455 = sand.u32 %s95, 1
        %s456 = smul.addr %s455, 4
        %s457 = scalar_lea.vmem [#allocation9], %s456
        %p458 = pneg %p108
        %p459 = pneg %p105
        %p460 = pneg %p129
        %p461 = pneg %p126
        %p462 = pneg %p150
        %p463 = pneg %p147
        %p464 = pneg %p171
        %p465 = pneg %p168
        %p466 = pneg %p192
        %p467 = pneg %p189
        %p468 = pneg %p213
        %p469 = pneg %p210
        %p470 = pneg %p234
        %p471 = pneg %p231
        %p472 = pneg %p260
        %p473 = pneg %p257
        %s474 = sand.u32 %s247, 1
        %s475 = scalar_lea.sflag [#allocation6], %s474
        %s476 = sand.u32 %s247, 1
        %s477 = smul.addr %s476, 8
        %s478 = scalar_lea.vmem [#allocation13], %s477
        %p479 = pneg %p286
        %p480 = pneg %p283
        %s481 = sand.u32 %s273, 1
        %s482 = scalar_lea.sflag [#allocation15], %s481
        %s483 = sand.u32 %s273, 1
        %s484 = smul.addr %s483, 32
        %s485 = scalar_lea.vmem [#allocation14], %s484
        %p487 = scmp.eq.s32.totalorder %s35, 0
        // Predicated region
        $region77: #{tpu_custom_call.1} parent=55 // pred_check
          %p488 = pneg %p487
        $region78: #{tpu_custom_call.1} parent=55 // pred_check_branch
          %490 = sbr.rel (%p488) target = $region80
        $region79: #{tpu_custom_call.1} parent=55 // pred_region
          %vm491 = vcmask 257024
          %492 = vst.msk [vmem:[#allocation2] sm:$0xf] %vm491, 0
          %493 = vst.msk [vmem:[#allocation2 + $0x4] sm:$0xf] %vm491, 0
          %494 = vst.msk [vmem:[#allocation2 + $0x8] sm:$0xf] %vm491, 0
          %495 = vst.msk [vmem:[#allocation2 + $0xc] sm:$0xf] %vm491, 0
          %496 = vst.msk [vmem:[#allocation2 + $0x10] sm:$0xf] %vm491, 0
          %497 = vst.msk [vmem:[#allocation2 + $0x14] sm:$0xf] %vm491, 0
        $region80: #{tpu_custom_call.1} parent=55 // pred_fallthru
          _
        %v498 = vld [vmem:[%s408] sm:$0xff]
        %v499 = vpack.c.bf16 %v498, %v498
        %vm500 = vcmask 257024
        %501 = vst.msk [vmem:[#allocation2] sm:$0xf] %vm500, %v499
        %v502 = vld [vmem:[%s417] sm:$0xf]
        %503 = vst.msk [vmem:[#allocation2 + $0x8] sm:$0xf] %vm500, %v502
        %v504 = vld [vmem:[%s426] sm:$0xf]
        %505 = vst.msk [vmem:[#allocation2 + $0x10] sm:$0xf] %vm500, %v504
        %v506 = vld [vmem:[#allocation2] sm:$0xf]
        %v507 = vld [vmem:[#allocation2 + $0x4] sm:$0xf]
        %v508 = vld [vmem:[#allocation2 + $0x8] sm:$0xf]
        %v509 = vld [vmem:[#allocation2 + $0xc] sm:$0xf]
        %v510 = vld [vmem:[#allocation2 + $0x10] sm:$0xf]
        %v511 = vld [vmem:[#allocation2 + $0x14] sm:$0xf]
        %v512 = vld [vmem:[#allocation10] sm:$0xf]
        %v513 = vld [vmem:[#allocation10 + $0x4] sm:$0xf]
        %v514 = vld [vmem:[#allocation10 + $0x8] sm:$0xf]
        %v515 = vld [vmem:[#allocation10 + $0xc] sm:$0xf]
        %v516 = vld [vmem:[%s4] sm:$0x1]
        %v518 = vlaneseq
        %v519 = vshrl.u32 %v518, 7
        %v520 = vsub.s32 0, %v519
        %v521 = vrot.slane %v516, %v520
        %v529 = vunpack.c.l.b16 %v506
        %v530 = vunpack.c.l.b16 %v507
        %v531 = vunpack.c.l.b16 %v508
        %v532 = vunpack.c.l.b16 %v509
        %v533 = vunpack.c.l.b16 %v510
        %v534 = vunpack.c.l.b16 %v511
        %v535 = vpack.c.b16 %v530, %v529
        %v536 = vpack.c.b16 %v532, %v531
        %v537 = vpack.c.b16 %v534, %v533
        %v542 = vunpack.c.l.b16 %v512
        %v543 = vunpack.c.l.b16 %v513
        %v544 = vunpack.c.l.b16 %v514
        %v545 = vunpack.c.l.b16 %v515
        %v546 = vpack.c.b16 %v543, %v542
        %v547 = vpack.c.b16 %v545, %v544
        %vm550 = vcmask 261120
        %v552 = vsel %vm550, %v535, 0
        %v555 = vsel %vm550, %v536, 0
        %v558 = vsel %vm550, %v537, 0
        %560 = vmatprep.subr.bf16.mxu0 0
        %561 = vmatpush1.bf16.msra.mxu0 0
        %562 = vmatprep.subr.bf16.mxu0 0
        %563 = vmatpush1.bf16.msra.mxu0 0
        %564 = vmatprep.subr.bf16.mxu0 0
        %565 = vmatpush1.bf16.msra.mxu0 0
        %566 = vmatprep.subr.bf16.mxu0 0
        %567 = vmatpush1.bf16.msra.mxu0 0
        %568 = vmatprep.subr.bf16.mxu0 0
        %569 = vmatpush1.bf16.msra.mxu0 0
        %570 = vmatprep.subr.bf16.mxu0 0
        %571 = vmatpush1.bf16.msra.mxu0 0
        %572 = vmatprep.subr.bf16.mxu0 0
        %573 = vmatpush1.bf16.msra.mxu0 %v547
        %574 = vmatprep.subr.bf16.mxu0 0
        %575 = vmatpush1.bf16.msra.mxu0 %v546
        %576 = vmatprep.subr.bf16.mxu0 0
        %577 = vmatpush2.bf16.msra.mxu0 0
        %578 = vmatprep.subr.bf16.mxu0 0
        %579 = vmatpush2.bf16.msra.mxu0 0
        %580 = vmatprep.subr.bf16.mxu0 0
        %581 = vmatpush2.bf16.msra.mxu0 0
        %582 = vmatprep.subr.bf16.mxu0 0
        %583 = vmatpush2.bf16.msra.mxu0 0
        %584 = vmatprep.subr.bf16.mxu0 0
        %585 = vmatpush2.bf16.msra.mxu0 0
        %586 = vmatprep.subr.bf16.mxu0 0
        %587 = vmatpush2.bf16.msra.mxu0 0
        %588 = vmatprep.subr.bf16.mxu0 0
        %589 = vmatpush2.bf16.msra.mxu0 0
        %590 = vmatprep.subr.bf16.mxu0 0
        %591 = vmatpush2.bf16.msra.mxu0 0
        %592 = vmatprep.mubr.bf16.mxu0 0
        %593 = vmatmul.mubr.bf16.gmra.mxu0 %v552
        %v594 = vpop.f32.mrf.mxu0
        %v595 = vadd.f32 %v521, %v594
        %v596 = vpop.f32.mrf.mxu0
        %v597 = vpop.f32.mrf.mxu0
        %v598 = vpop.f32.mrf.mxu0
        %599 = vmatprep.mubr.bf16.mxu0 0
        %600 = vmatmul.mubr.bf16.gmra.mxu0 %v555
        %v601 = vpop.f32.mrf.mxu0
        %v602 = vadd.f32 %v521, %v601
        %v603 = vpop.f32.mrf.mxu0
        %v604 = vpop.f32.mrf.mxu0
        %v605 = vpop.f32.mrf.mxu0
        %606 = vmatprep.mubr.bf16.mxu0 0
        %607 = vmatmul.mubr.bf16.gmra.mxu0 %v558
        %v608 = vpop.f32.mrf.mxu0
        %v609 = vadd.f32 %v521, %v608
        %v610 = vpop.f32.mrf.mxu0
        %v611 = vpop.f32.mrf.mxu0
        %v612 = vpop.f32.mrf.mxu0
        %613 = vdwg.mxu0
        %v614 = vmul.f32 %v595, 0.17677669
        %v615 = vpack.c.bf16 %v614, %v614
        %v616 = vpack.c.bf16 %v602, %v602
        %v617 = vpack.c.bf16 %v609, %v609
        %vm618 = vcmask 64512
        %v620 = vsel %vm618, %v615, 0
        %v623 = vsel %vm618, %v616, 0
        %625 = vmatprep.subr.bf16.mxu0 0
        %626 = vmatpush1.bf16.xpose.msra.mxu0 0
        %627 = vmatprep.subr.bf16.mxu0 0
        %628 = vmatpush1.bf16.xpose.msra.mxu0 0
        %629 = vmatprep.subr.bf16.mxu0 0
        %630 = vmatpush1.bf16.xpose.msra.mxu0 0
        %631 = vmatprep.subr.bf16.mxu0 0
        %632 = vmatpush1.bf16.xpose.msra.mxu0 0
        %633 = vmatprep.subr.bf16.mxu0 0
        %634 = vmatpush1.bf16.xpose.msra.mxu0 0
        %635 = vmatprep.subr.bf16.mxu0 0
        %636 = vmatpush1.bf16.xpose.msra.mxu0 0
        %637 = vmatprep.subr.bf16.mxu0 0
        %638 = vmatpush1.bf16.xpose.msra.mxu0 0
        %639 = vmatprep.subr.bf16.mxu0 0
        %640 = vmatpush1.bf16.xpose.msra.mxu0 %v623
        %641 = vmatprep.subr.bf16.mxu0 0
        %642 = vmatpush2.bf16.xpose.msra.mxu0 0
        %643 = vmatprep.subr.bf16.mxu0 0
        %644 = vmatpush2.bf16.xpose.msra.mxu0 0
        %645 = vmatprep.subr.bf16.mxu0 0
        %646 = vmatpush2.bf16.xpose.msra.mxu0 0
        %647 = vmatprep.subr.bf16.mxu0 0
        %648 = vmatpush2.bf16.xpose.msra.mxu0 0
        %649 = vmatprep.subr.bf16.mxu0 0
        %650 = vmatpush2.bf16.xpose.msra.mxu0 0
        %651 = vmatprep.subr.bf16.mxu0 0
        %652 = vmatpush2.bf16.xpose.msra.mxu0 0
        %653 = vmatprep.subr.bf16.mxu0 0
        %654 = vmatpush2.bf16.xpose.msra.mxu0 0
        %655 = vmatprep.subr.bf16.mxu0 0
        %656 = vmatpush2.bf16.xpose.msra.mxu0 0
        %657 = vmatprep.mubr.bf16.mxu0 0
        %658 = vmatmul.mubr.bf16.gmra.mxu0 %v620
        %v659 = vpop.f32.mrf.mxu0
        %v660 = vadd.f32 0.0, %v659
        %v661 = vpop.f32.mrf.mxu0
        %v662 = vpop.f32.mrf.mxu0
        %v663 = vpop.f32.mrf.mxu0
        %664 = vdwg.mxu0
        %v665 = vsel %vm618, %v660, -inf
        %666 = vmax.xlane.f32.xlu0 %v665
        %v667 = vpop.xlane.xlu0 %666
        %v668 = vsub.f32 %v660, %v667
        %v669 = vmul.f32 %v668, 1.442695
        %v670 = vpow.pop %v669
        %v671 = vsel %vm618, %v670, 0.0
        %672 = vadd.xlane.f32.xlu0 %v671
        %v673 = vpop.xlane.xlu0 %672
        %v674 = vrcp.pop %v673
        %v675 = vmul.f32 %v670, %v674
        %676 = vst.msk [vmem:[%s485] sm:$0xff] %vm618, %v675
        %v677 = vpack.c.bf16 %v675, %v675
        %v679 = vsel %vm618, %v677, 0
        %vm681 = vcmask 1043456
        %v683 = vsel %vm681, %v617, 0
        %685 = vmatprep.subr.bf16.mxu0 0
        %686 = vmatpush1.bf16.msra.mxu0 0
        %687 = vmatprep.subr.bf16.mxu0 0
        %688 = vmatpush1.bf16.msra.mxu0 0
        %689 = vmatprep.subr.bf16.mxu0 0
        %690 = vmatpush1.bf16.msra.mxu0 0
        %691 = vmatprep.subr.bf16.mxu0 0
        %692 = vmatpush1.bf16.msra.mxu0 0
        %693 = vmatprep.subr.bf16.mxu0 0
        %694 = vmatpush1.bf16.msra.mxu0 0
        %695 = vmatprep.subr.bf16.mxu0 0
        %696 = vmatpush1.bf16.msra.mxu0 0
        %697 = vmatprep.subr.bf16.mxu0 0
        %698 = vmatpush1.bf16.msra.mxu0 0
        %699 = vmatprep.subr.bf16.mxu0 0
        %700 = vmatpush1.bf16.msra.mxu0 %v683
        %701 = vmatprep.subr.bf16.mxu0 0
        %702 = vmatpush2.bf16.msra.mxu0 0
        %703 = vmatprep.subr.bf16.mxu0 0
        %704 = vmatpush2.bf16.msra.mxu0 0
        %705 = vmatprep.subr.bf16.mxu0 0
        %706 = vmatpush2.bf16.msra.mxu0 0
        %707 = vmatprep.subr.bf16.mxu0 0
        %708 = vmatpush2.bf16.msra.mxu0 0
        %709 = vmatprep.subr.bf16.mxu0 0
        %710 = vmatpush2.bf16.msra.mxu0 0
        %711 = vmatprep.subr.bf16.mxu0 0
        %712 = vmatpush2.bf16.msra.mxu0 0
        %713 = vmatprep.subr.bf16.mxu0 0
        %714 = vmatpush2.bf16.msra.mxu0 0
        %715 = vmatprep.subr.bf16.mxu0 0
        %716 = vmatpush2.bf16.msra.mxu0 0
        %717 = vmatprep.mubr.bf16.mxu0 0
        %718 = vmatmul.mubr.bf16.gmra.mxu0 %v679
        %v719 = vpop.f32.mrf.mxu0
        %v720 = vadd.f32 0.0, %v719
        %v721 = vpop.f32.mrf.mxu0
        %v722 = vpop.f32.mrf.mxu0
        %v723 = vpop.f32.mrf.mxu0
        %724 = vdwg.mxu0
        %v725 = vpack.c.bf16 %v720, %v720
        %vm726 = vcmask 60416
        %727 = vst.msk [vmem:[#allocation3] sm:$0xf] %vm726, %v725
        %729 = vrot.lane.b32.xlu0 %v615, 120
        %v730 = vpop.permute.xlu0 %729
        %732 = vrot.lane.b32.xlu0 %v616, 120
        %v733 = vpop.permute.xlu0 %732
        %v735 = vsel %vm618, %v730, 0
        %v738 = vsel %vm618, %v733, 0
        %740 = vmatprep.subr.bf16.mxu0 0
        %741 = vmatpush1.bf16.xpose.msra.mxu0 0
        %742 = vmatprep.subr.bf16.mxu0 0
        %743 = vmatpush1.bf16.xpose.msra.mxu0 0
        %744 = vmatprep.subr.bf16.mxu0 0
        %745 = vmatpush1.bf16.xpose.msra.mxu0 0
        %746 = vmatprep.subr.bf16.mxu0 0
        %747 = vmatpush1.bf16.xpose.msra.mxu0 0
        %748 = vmatprep.subr.bf16.mxu0 0
        %749 = vmatpush1.bf16.xpose.msra.mxu0 0
        %750 = vmatprep.subr.bf16.mxu0 0
        %751 = vmatpush1.bf16.xpose.msra.mxu0 0
        %752 = vmatprep.subr.bf16.mxu0 0
        %753 = vmatpush1.bf16.xpose.msra.mxu0 0
        %754 = vmatprep.subr.bf16.mxu0 0
        %755 = vmatpush1.bf16.xpose.msra.mxu0 %v738
        %756 = vmatprep.subr.bf16.mxu0 0
        %757 = vmatpush2.bf16.xpose.msra.mxu0 0
        %758 = vmatprep.subr.bf16.mxu0 0
        %759 = vmatpush2.bf16.xpose.msra.mxu0 0
        %760 = vmatprep.subr.bf16.mxu0 0
        %761 = vmatpush2.bf16.xpose.msra.mxu0 0
        %762 = vmatprep.subr.bf16.mxu0 0
        %763 = vmatpush2.bf16.xpose.msra.mxu0 0
        %764 = vmatprep.subr.bf16.mxu0 0
        %765 = vmatpush2.bf16.xpose.msra.mxu0 0
        %766 = vmatprep.subr.bf16.mxu0 0
        %767 = vmatpush2.bf16.xpose.msra.mxu0 0
        %768 = vmatprep.subr.bf16.mxu0 0
        %769 = vmatpush2.bf16.xpose.msra.mxu0 0
        %770 = vmatprep.subr.bf16.mxu0 0
        %771 = vmatpush2.bf16.xpose.msra.mxu0 0
        %772 = vmatprep.mubr.bf16.mxu0 0
        %773 = vmatmul.mubr.bf16.gmra.mxu0 %v735
        %v774 = vpop.f32.mrf.mxu0
        %v775 = vadd.f32 0.0, %v774
        %v776 = vpop.f32.mrf.mxu0
        %v777 = vpop.f32.mrf.mxu0
        %v778 = vpop.f32.mrf.mxu0
        %779 = vdwg.mxu0
        %v780 = vsel %vm618, %v775, -inf
        %781 = vmax.xlane.f32.xlu0 %v780
        %v782 = vpop.xlane.xlu0 %781
        %v783 = vsub.f32 %v775, %v782
        %v784 = vmul.f32 %v783, 1.442695
        %v785 = vpow.pop %v784
        %v786 = vsel %vm618, %v785, 0.0
        %787 = vadd.xlane.f32.xlu0 %v786
        %v788 = vpop.xlane.xlu0 %787
        %v789 = vrcp.pop %v788
        %v790 = vmul.f32 %v785, %v789
        %s791 = scalar_lea.vmem %s485, 8 [#allocation14]
        %792 = vst.msk [vmem:[%s791] sm:$0xff] %vm618, %v790
        %v793 = vpack.c.bf16 %v790, %v790
        %795 = vrot.lane.b32.xlu0 %v617, 120
        %v796 = vpop.permute.xlu0 %795
        %v798 = vsel %vm618, %v793, 0
        %v801 = vsel %vm681, %v796, 0
        %803 = vmatprep.subr.bf16.mxu0 0
        %804 = vmatpush1.bf16.msra.mxu0 0
        %805 = vmatprep.subr.bf16.mxu0 0
        %806 = vmatpush1.bf16.msra.mxu0 0
        %807 = vmatprep.subr.bf16.mxu0 0
        %808 = vmatpush1.bf16.msra.mxu0 0
        %809 = vmatprep.subr.bf16.mxu0 0
        %810 = vmatpush1.bf16.msra.mxu0 0
        %811 = vmatprep.subr.bf16.mxu0 0
        %812 = vmatpush1.bf16.msra.mxu0 0
        %813 = vmatprep.subr.bf16.mxu0 0
        %814 = vmatpush1.bf16.msra.mxu0 0
        %815 = vmatprep.subr.bf16.mxu0 0
        %816 = vmatpush1.bf16.msra.mxu0 0
        %817 = vmatprep.subr.bf16.mxu0 0
        %818 = vmatpush1.bf16.msra.mxu0 %v801
        %819 = vmatprep.subr.bf16.mxu0 0
        %820 = vmatpush2.bf16.msra.mxu0 0
        %821 = vmatprep.subr.bf16.mxu0 0
        %822 = vmatpush2.bf16.msra.mxu0 0
        %823 = vmatprep.subr.bf16.mxu0 0
        %824 = vmatpush2.bf16.msra.mxu0 0
        %825 = vmatprep.subr.bf16.mxu0 0
        %826 = vmatpush2.bf16.msra.mxu0 0
        %827 = vmatprep.subr.bf16.mxu0 0
        %828 = vmatpush2.bf16.msra.mxu0 0
        %829 = vmatprep.subr.bf16.mxu0 0
        %830 = vmatpush2.bf16.msra.mxu0 0
        %831 = vmatprep.subr.bf16.mxu0 0
        %832 = vmatpush2.bf16.msra.mxu0 0
        %833 = vmatprep.subr.bf16.mxu0 0
        %834 = vmatpush2.bf16.msra.mxu0 0
        %835 = vmatprep.mubr.bf16.mxu0 0
        %836 = vmatmul.mubr.bf16.gmra.mxu0 %v798
        %v837 = vpop.f32.mrf.mxu0
        %v838 = vadd.f32 0.0, %v837
        %v839 = vpop.f32.mrf.mxu0
        %v840 = vpop.f32.mrf.mxu0
        %v841 = vpop.f32.mrf.mxu0
        %842 = vdwg.mxu0
        %v843 = vpack.c.bf16 %v838, %v838
        %v845 = vunpack.c.l.b16 %v843
        %v846 = vpack.c.b16 %v845, %v845
        %847 = vrot.lane.b32.xlu0 %v846, 8
        %v848 = vpop.permute.xlu0 %847
        %vm850 = vcmask 126016
        %851 = vst.msk [vmem:[#allocation3] sm:$0xf] %vm850, %v848
        %852 = vrot.lane.b32.xlu0 %v615, 112
        %v853 = vpop.permute.xlu0 %852
        %854 = vrot.lane.b32.xlu0 %v616, 112
        %v855 = vpop.permute.xlu0 %854
        %v857 = vsel %vm618, %v853, 0
        %v860 = vsel %vm618, %v855, 0
        %862 = vmatprep.subr.bf16.mxu0 0
        %863 = vmatpush1.bf16.xpose.msra.mxu0 0
        %864 = vmatprep.subr.bf16.mxu0 0
        %865 = vmatpush1.bf16.xpose.msra.mxu0 0
        %866 = vmatprep.subr.bf16.mxu0 0
        %867 = vmatpush1.bf16.xpose.msra.mxu0 0
        %868 = vmatprep.subr.bf16.mxu0 0
        %869 = vmatpush1.bf16.xpose.msra.mxu0 0
        %870 = vmatprep.subr.bf16.mxu0 0
        %871 = vmatpush1.bf16.xpose.msra.mxu0 0
        %872 = vmatprep.subr.bf16.mxu0 0
        %873 = vmatpush1.bf16.xpose.msra.mxu0 0
        %874 = vmatprep.subr.bf16.mxu0 0
        %875 = vmatpush1.bf16.xpose.msra.mxu0 0
        %876 = vmatprep.subr.bf16.mxu0 0
        %877 = vmatpush1.bf16.xpose.msra.mxu0 %v860
        %878 = vmatprep.subr.bf16.mxu0 0
        %879 = vmatpush2.bf16.xpose.msra.mxu0 0
        %880 = vmatprep.subr.bf16.mxu0 0
        %881 = vmatpush2.bf16.xpose.msra.mxu0 0
        %882 = vmatprep.subr.bf16.mxu0 0
        %883 = vmatpush2.bf16.xpose.msra.mxu0 0
        %884 = vmatprep.subr.bf16.mxu0 0
        %885 = vmatpush2.bf16.xpose.msra.mxu0 0
        %886 = vmatprep.subr.bf16.mxu0 0
        %887 = vmatpush2.bf16.xpose.msra.mxu0 0
        %888 = vmatprep.subr.bf16.mxu0 0
        %889 = vmatpush2.bf16.xpose.msra.mxu0 0
        %890 = vmatprep.subr.bf16.mxu0 0
        %891 = vmatpush2.bf16.xpose.msra.mxu0 0
        %892 = vmatprep.subr.bf16.mxu0 0
        %893 = vmatpush2.bf16.xpose.msra.mxu0 0
        %894 = vmatprep.mubr.bf16.mxu0 0
        %895 = vmatmul.mubr.bf16.gmra.mxu0 %v857
        %v896 = vpop.f32.mrf.mxu0
        %v897 = vadd.f32 0.0, %v896
        %v898 = vpop.f32.mrf.mxu0
        %v899 = vpop.f32.mrf.mxu0
        %v900 = vpop.f32.mrf.mxu0
        %901 = vdwg.mxu0
        %v902 = vsel %vm618, %v897, -inf
        %903 = vmax.xlane.f32.xlu0 %v902
        %v904 = vpop.xlane.xlu0 %903
        %v905 = vsub.f32 %v897, %v904
        %v906 = vmul.f32 %v905, 1.442695
        %v907 = vpow.pop %v906
        %v908 = vsel %vm618, %v907, 0.0
        %909 = vadd.xlane.f32.xlu0 %v908
        %v910 = vpop.xlane.xlu0 %909
        %v911 = vrcp.pop %v910
        %v912 = vmul.f32 %v907, %v911
        %s913 = scalar_lea.vmem %s485, 16 [#allocation14]
        %914 = vst.msk [vmem:[%s913] sm:$0xff] %vm618, %v912
        %v915 = vpack.c.bf16 %v912, %v912
        %916 = vrot.lane.b32.xlu0 %v617, 112
        %v917 = vpop.permute.xlu0 %916
        %v919 = vsel %vm618, %v915, 0
        %v922 = vsel %vm681, %v917, 0
        %924 = vmatprep.subr.bf16.mxu0 0
        %925 = vmatpush1.bf16.msra.mxu0 0
        %926 = vmatprep.subr.bf16.mxu0 0
        %927 = vmatpush1.bf16.msra.mxu0 0
        %928 = vmatprep.subr.bf16.mxu0 0
        %929 = vmatpush1.bf16.msra.mxu0 0
        %930 = vmatprep.subr.bf16.mxu0 0
        %931 = vmatpush1.bf16.msra.mxu0 0
        %932 = vmatprep.subr.bf16.mxu0 0
        %933 = vmatpush1.bf16.msra.mxu0 0
        %934 = vmatprep.subr.bf16.mxu0 0
        %935 = vmatpush1.bf16.msra.mxu0 0
        %936 = vmatprep.subr.bf16.mxu0 0
        %937 = vmatpush1.bf16.msra.mxu0 0
        %938 = vmatprep.subr.bf16.mxu0 0
        %939 = vmatpush1.bf16.msra.mxu0 %v922
        %940 = vmatprep.subr.bf16.mxu0 0
        %941 = vmatpush2.bf16.msra.mxu0 0
        %942 = vmatprep.subr.bf16.mxu0 0
        %943 = vmatpush2.bf16.msra.mxu0 0
        %944 = vmatprep.subr.bf16.mxu0 0
        %945 = vmatpush2.bf16.msra.mxu0 0
        %946 = vmatprep.subr.bf16.mxu0 0
        %947 = vmatpush2.bf16.msra.mxu0 0
        %948 = vmatprep.subr.bf16.mxu0 0
        %949 = vmatpush2.bf16.msra.mxu0 0
        %950 = vmatprep.subr.bf16.mxu0 0
        %951 = vmatpush2.bf16.msra.mxu0 0
        %952 = vmatprep.subr.bf16.mxu0 0
        %953 = vmatpush2.bf16.msra.mxu0 0
        %954 = vmatprep.subr.bf16.mxu0 0
        %955 = vmatpush2.bf16.msra.mxu0 0
        %956 = vmatprep.mubr.bf16.mxu0 0
        %957 = vmatmul.mubr.bf16.gmra.mxu0 %v919
        %v958 = vpop.f32.mrf.mxu0
        %v959 = vadd.f32 0.0, %v958
        %v960 = vpop.f32.mrf.mxu0
        %v961 = vpop.f32.mrf.mxu0
        %v962 = vpop.f32.mrf.mxu0
        %963 = vdwg.mxu0
        %v964 = vpack.c.bf16 %v959, %v959
        %v966 = vunpack.c.l.b16 %v964
        %v967 = vpack.c.b16 %v966, %v966
        %968 = vrot.lane.b32.xlu0 %v967, 16
        %v969 = vpop.permute.xlu0 %968
        %vm971 = vcmask 191616
        %972 = vst.msk [vmem:[#allocation3] sm:$0xf] %vm971, %v969
        %973 = vrot.lane.b32.xlu0 %v615, 104
        %v974 = vpop.permute.xlu0 %973
        %975 = vrot.lane.b32.xlu0 %v616, 104
        %v976 = vpop.permute.xlu0 %975
        %v978 = vsel %vm618, %v974, 0
        %v981 = vsel %vm618, %v976, 0
        %983 = vmatprep.subr.bf16.mxu0 0
        %984 = vmatpush1.bf16.xpose.msra.mxu0 0
        %985 = vmatprep.subr.bf16.mxu0 0
        %986 = vmatpush1.bf16.xpose.msra.mxu0 0
        %987 = vmatprep.subr.bf16.mxu0 0
        %988 = vmatpush1.bf16.xpose.msra.mxu0 0
        %989 = vmatprep.subr.bf16.mxu0 0
        %990 = vmatpush1.bf16.xpose.msra.mxu0 0
        %991 = vmatprep.subr.bf16.mxu0 0
        %992 = vmatpush1.bf16.xpose.msra.mxu0 0
        %993 = vmatprep.subr.bf16.mxu0 0
        %994 = vmatpush1.bf16.xpose.msra.mxu0 0
        %995 = vmatprep.subr.bf16.mxu0 0
        %996 = vmatpush1.bf16.xpose.msra.mxu0 0
        %997 = vmatprep.subr.bf16.mxu0 0
        %998 = vmatpush1.bf16.xpose.msra.mxu0 %v981
        %999 = vmatprep.subr.bf16.mxu0 0
        %1000 = vmatpush2.bf16.xpose.msra.mxu0 0
        %1001 = vmatprep.subr.bf16.mxu0 0
        %1002 = vmatpush2.bf16.xpose.msra.mxu0 0
        %1003 = vmatprep.subr.bf16.mxu0 0
        %1004 = vmatpush2.bf16.xpose.msra.mxu0 0
        %1005 = vmatprep.subr.bf16.mxu0 0
        %1006 = vmatpush2.bf16.xpose.msra.mxu0 0
        %1007 = vmatprep.subr.bf16.mxu0 0
        %1008 = vmatpush2.bf16.xpose.msra.mxu0 0
        %1009 = vmatprep.subr.bf16.mxu0 0
        %1010 = vmatpush2.bf16.xpose.msra.mxu0 0
        %1011 = vmatprep.subr.bf16.mxu0 0
        %1012 = vmatpush2.bf16.xpose.msra.mxu0 0
        %1013 = vmatprep.subr.bf16.mxu0 0
        %1014 = vmatpush2.bf16.xpose.msra.mxu0 0
        %1015 = vmatprep.mubr.bf16.mxu0 0
        %1016 = vmatmul.mubr.bf16.gmra.mxu0 %v978
        %v1017 = vpop.f32.mrf.mxu0
        %v1018 = vadd.f32 0.0, %v1017
        %v1019 = vpop.f32.mrf.mxu0
        %v1020 = vpop.f32.mrf.mxu0
        %v1021 = vpop.f32.mrf.mxu0
        %1022 = vdwg.mxu0
        %v1023 = vsel %vm618, %v1018, -inf
        %1024 = vmax.xlane.f32.xlu0 %v1023
        %v1025 = vpop.xlane.xlu0 %1024
        %v1026 = vsub.f32 %v1018, %v1025
        %v1027 = vmul.f32 %v1026, 1.442695
        %v1028 = vpow.pop %v1027
        %v1029 = vsel %vm618, %v1028, 0.0
        %1030 = vadd.xlane.f32.xlu0 %v1029
        %v1031 = vpop.xlane.xlu0 %1030
        %v1032 = vrcp.pop %v1031
        %v1033 = vmul.f32 %v1028, %v1032
        %s1034 = scalar_lea.vmem %s485, 24 [#allocation14]
        %1035 = vst.msk [vmem:[%s1034] sm:$0xff] %vm618, %v1033
        %v1036 = vpack.c.bf16 %v1033, %v1033
        %1037 = vrot.lane.b32.xlu0 %v617, 104
        %v1038 = vpop.permute.xlu0 %1037
        %v1040 = vsel %vm618, %v1036, 0
        %v1043 = vsel %vm681, %v1038, 0
        %1045 = vmatprep.subr.bf16.mxu0 0
        %1046 = vmatpush1.bf16.msra.mxu0 0
        %1047 = vmatprep.subr.bf16.mxu0 0
        %1048 = vmatpush1.bf16.msra.mxu0 0
        %1049 = vmatprep.subr.bf16.mxu0 0
        %1050 = vmatpush1.bf16.msra.mxu0 0
        %1051 = vmatprep.subr.bf16.mxu0 0
        %1052 = vmatpush1.bf16.msra.mxu0 0
        %1053 = vmatprep.subr.bf16.mxu0 0
        %1054 = vmatpush1.bf16.msra.mxu0 0
        %1055 = vmatprep.subr.bf16.mxu0 0
        %1056 = vmatpush1.bf16.msra.mxu0 0
        %1057 = vmatprep.subr.bf16.mxu0 0
        %1058 = vmatpush1.bf16.msra.mxu0 0
        %1059 = vmatprep.subr.bf16.mxu0 0
        %1060 = vmatpush1.bf16.msra.mxu0 %v1043
        %1061 = vmatprep.subr.bf16.mxu0 0
        %1062 = vmatpush2.bf16.msra.mxu0 0
        %1063 = vmatprep.subr.bf16.mxu0 0
        %1064 = vmatpush2.bf16.msra.mxu0 0
        %1065 = vmatprep.subr.bf16.mxu0 0
        %1066 = vmatpush2.bf16.msra.mxu0 0
        %1067 = vmatprep.subr.bf16.mxu0 0
        %1068 = vmatpush2.bf16.msra.mxu0 0
        %1069 = vmatprep.subr.bf16.mxu0 0
        %1070 = vmatpush2.bf16.msra.mxu0 0
        %1071 = vmatprep.subr.bf16.mxu0 0
        %1072 = vmatpush2.bf16.msra.mxu0 0
        %1073 = vmatprep.subr.bf16.mxu0 0
        %1074 = vmatpush2.bf16.msra.mxu0 0
        %1075 = vmatprep.subr.bf16.mxu0 0
        %1076 = vmatpush2.bf16.msra.mxu0 0
        %1077 = vmatprep.mubr.bf16.mxu0 0
        %1078 = vmatmul.mubr.bf16.gmra.mxu0 %v1040
        %v1079 = vpop.f32.mrf.mxu0
        %v1080 = vadd.f32 0.0, %v1079
        %v1081 = vpop.f32.mrf.mxu0
        %v1082 = vpop.f32.mrf.mxu0
        %v1083 = vpop.f32.mrf.mxu0
        %1084 = vdwg.mxu0
        %v1085 = vpack.c.bf16 %v1080, %v1080
        %v1087 = vunpack.c.l.b16 %v1085
        %v1088 = vpack.c.b16 %v1087, %v1087
        %1089 = vrot.lane.b32.xlu0 %v1088, 24
        %v1090 = vpop.permute.xlu0 %1089
        %vm1092 = vcmask 257216
        %1093 = vst.msk [vmem:[#allocation3] sm:$0xf] %vm1092, %v1090
        %v1094 = vld [vmem:[#allocation3] sm:$0xf]
        %v1095 = vld [vmem:[#allocation12] sm:$0xf]
        %v1096 = vld [vmem:[#allocation12 + $0x4] sm:$0xf]
        %v1097 = vld [vmem:[#allocation12 + $0x8] sm:$0xf]
        %v1098 = vld [vmem:[#allocation12 + $0xc] sm:$0xf]
        %v1099 = vld [vmem:[%s6] sm:$0x1]
        %v1101 = vlaneseq
        %v1102 = vshrl.u32 %v1101, 7
        %v1103 = vsub.s32 0, %v1102
        %v1104 = vrot.slane %v1099, %v1103
        %v1110 = vunpack.c.l.b16 %v1095
        %v1111 = vunpack.c.l.b16 %v1096
        %v1112 = vunpack.c.l.b16 %v1097
        %v1113 = vunpack.c.l.b16 %v1098
        %v1114 = vpack.c.b16 %v1111, %v1110
        %v1115 = vpack.c.b16 %v1113, %v1112
        %v1119 = vsel %vm550, %v1094, 0
        %1121 = vmatprep.subr.bf16.mxu0 0
        %1122 = vmatpush1.bf16.msra.mxu0 0
        %1123 = vmatprep.subr.bf16.mxu0 0
        %1124 = vmatpush1.bf16.msra.mxu0 0
        %1125 = vmatprep.subr.bf16.mxu0 0
        %1126 = vmatpush1.bf16.msra.mxu0 0
        %1127 = vmatprep.subr.bf16.mxu0 0
        %1128 = vmatpush1.bf16.msra.mxu0 0
        %1129 = vmatprep.subr.bf16.mxu0 0
        %1130 = vmatpush1.bf16.msra.mxu0 0
        %1131 = vmatprep.subr.bf16.mxu0 0
        %1132 = vmatpush1.bf16.msra.mxu0 0
        %1133 = vmatprep.subr.bf16.mxu0 0
        %1134 = vmatpush1.bf16.msra.mxu0 %v1115
        %1135 = vmatprep.subr.bf16.mxu0 0
        %1136 = vmatpush1.bf16.msra.mxu0 %v1114
        %1137 = vmatprep.subr.bf16.mxu0 0
        %1138 = vmatpush2.bf16.msra.mxu0 0
        %1139 = vmatprep.subr.bf16.mxu0 0
        %1140 = vmatpush2.bf16.msra.mxu0 0
        %1141 = vmatprep.subr.bf16.mxu0 0
        %1142 = vmatpush2.bf16.msra.mxu0 0
        %1143 = vmatprep.subr.bf16.mxu0 0
        %1144 = vmatpush2.bf16.msra.mxu0 0
        %1145 = vmatprep.subr.bf16.mxu0 0
        %1146 = vmatpush2.bf16.msra.mxu0 0
        %1147 = vmatprep.subr.bf16.mxu0 0
        %1148 = vmatpush2.bf16.msra.mxu0 0
        %1149 = vmatprep.subr.bf16.mxu0 0
        %1150 = vmatpush2.bf16.msra.mxu0 0
        %1151 = vmatprep.subr.bf16.mxu0 0
        %1152 = vmatpush2.bf16.msra.mxu0 0
        %1153 = vmatprep.mubr.bf16.mxu0 0
        %1154 = vmatmul.mubr.bf16.gmra.mxu0 %v1119
        %v1155 = vpop.f32.mrf.mxu0
        %v1156 = vadd.f32 %v1104, %v1155
        %v1157 = vpop.f32.mrf.mxu0
        %v1158 = vpop.f32.mrf.mxu0
        %v1159 = vpop.f32.mrf.mxu0
        %1160 = vdwg.mxu0
        %v1161 = vld [vmem:[%s408] sm:$0xff]
        %v1162 = vadd.f32 %v1161, %v1156
        %v1163 = vsel %vm550, %v1162, 0.0
        %1164 = vadd.xlane.f32.xlu0 %v1163
        %v1165 = vpop.xlane.xlu0 %1164
        %v1166 = vrcp.pop 32.0
        %v1167 = vmul.f32 %v1165, %v1166
        %v1168 = vsub.f32 %v1162, %v1167
        %v1169 = vmul.f32 %v1168, %v1168
        %v1170 = vsel %vm550, %v1169, 0.0
        %1171 = vadd.xlane.f32.xlu0 %v1170
        %v1172 = vpop.xlane.xlu0 %1171
        %v1173 = vmul.f32 %v1172, %v1166
        %v1174 = vadd.f32 %v1173, 1e-06
        %v1175 = vrsqrt.pop %v1174
        %v1176 = vmul.f32 %v1168, %v1175
        %v1177 = vld [vmem:[%s7] sm:$0x1]
        %v1179 = vlaneseq
        %v1180 = vshrl.u32 %v1179, 7
        %v1181 = vsub.s32 0, %v1180
        %v1182 = vrot.slane %v1177, %v1181
        %v1184 = vmul.f32 %v1176, %v1182
        %v1185 = vld [vmem:[%s8] sm:$0x1]
        %v1187 = vlaneseq
        %v1188 = vshrl.u32 %v1187, 7
        %v1189 = vsub.s32 0, %v1188
        %v1190 = vrot.slane %v1185, %v1189
        %v1192 = vadd.f32 %v1184, %v1190
        %1193 = vst.msk [vmem:[%s478] sm:$0xff] %vm550, %v1192
        %s1194 = sand.u32 %s247, 1
        %s1195 = scalar_lea.sflag [#allocation6], %s1194
        %s1196 = sand.u32 %s247, 1
        %s1197 = smul.addr %s1196, 8
        %s1198 = scalar_lea.vmem [#allocation13], %s1197
        %s1199 = sand.u32 %s273, 1
        %s1200 = scalar_lea.sflag [#allocation15], %s1199
        %s1201 = sand.u32 %s273, 1
        %s1202 = smul.addr %s1201, 32
        %s1203 = scalar_lea.vmem [#allocation14], %s1202
        // Predicated region
        $region81: #{tpu_custom_call.1} parent=55 // pred_check
          %p1204 = pneg %p257
        $region82: #{tpu_custom_call.1} parent=55 // pred_check_branch
          %1206 = sbr.rel (%p1204) target = $region84
        $region83: #{tpu_custom_call.1} parent=55 // pred_region
          %s1208 = ssub.s32 128, 128
          %1209 = vsyncadd %s1195, %s1208
          %s1210 = smul.addr %s35, 128
          %s1211 = scalar_lea.hbm %s9, %s1210
          %s1213 = sshll.u32 %s1198, 4
          %s1214 = int_to_ptr.vmem [resolvable:$true] %s1213
          %1216 = dma.vmem_to_hbm [thread:$0]  %s1214, 128, %s1211, %s1195
        $region84: #{tpu_custom_call.1} parent=55 // pred_fallthru
          _
        // Predicated region
        $region85: #{tpu_custom_call.1} parent=55 // pred_check
          %p1217 = pneg %p283
        $region86: #{tpu_custom_call.1} parent=55 // pred_check_branch
          %1219 = sbr.rel (%p1217) target = $region88
        $region87: #{tpu_custom_call.1} parent=55 // pred_region
          %s1221 = ssub.s32 512, 512
          %1222 = vsyncadd %s1200, %s1221
          %s1223 = smul.addr %s35, 4
          %s1224 = smul.addr %s1223, 128
          %s1225 = scalar_lea.hbm %s10, %s1224
          %s1226 = sshll.u32 %s1203, 4
          %s1227 = int_to_ptr.vmem [resolvable:$true] %s1226
          %1232 = dma.vmem_to_hbm [thread:$0]  %s1227, 512, %s1225, %s1200, 128, 128, 8
        $region88: #{tpu_custom_call.1} parent=55 // pred_fallthru
          _
      $region56: #{tpu_custom_call.1} parent=5 // pred_fallthru
        _
      %p1233 = scmp.le.s32.totalorder 2, %s30
      // Predicated region
      $region89: #{tpu_custom_call.1} parent=5 // pred_check
        %p1234 = pneg %p1233
      $region90: #{tpu_custom_call.1} parent=5 // pred_check_branch
        %1236 = sbr.rel (%p1234) target = $region92
      $region91: #{tpu_custom_call.1} parent=5 // pred_region
        %s1237 = ssub.s32 %s30, 2
        // Predicated region
        $region93: #{tpu_custom_call.1} parent=91 // pred_check
          %p1238 = pneg %p263
        $region94: #{tpu_custom_call.1} parent=91 // pred_check_branch
          %1240 = sbr.rel (%p1238) target = $region96
        $region95: #{tpu_custom_call.1} parent=91 // pred_region
          %s1241 = sand.u32 %s248, 1
          %s1242 = scalar_lea.sflag [#allocation6], %s1241
          %s1243 = sand.u32 %s248, 1
          %s1244 = smul.addr %s1243, 8
          %s1245 = scalar_lea.vmem [#allocation13], %s1244
          %1246 = dma.done %s1242, 128
        $region96: #{tpu_custom_call.1} parent=91 // pred_fallthru
          _
        // Predicated region
        $region97: #{tpu_custom_call.1} parent=91 // pred_check
          %p1247 = pneg %p289
        $region98: #{tpu_custom_call.1} parent=91 // pred_check_branch
          %1249 = sbr.rel (%p1247) target = $region100
        $region99: #{tpu_custom_call.1} parent=91 // pred_region
          %s1250 = sand.u32 %s274, 1
          %s1251 = scalar_lea.sflag [#allocation15], %s1250
          %s1252 = sand.u32 %s274, 1
          %s1253 = smul.addr %s1252, 32
          %s1254 = scalar_lea.vmem [#allocation14], %s1253
          %1255 = dma.done %s1251, 512
        $region100: #{tpu_custom_call.1} parent=91 // pred_fallthru
          _
      $region92: #{tpu_custom_call.1} parent=5 // pred_fallthru
        _
    $region6: #{tpu_custom_call.1} parent=1 // loop_footer
      %s34 = sadd.s32 1, %s30
    $region7: #{tpu_custom_call.1} parent=1 // loop_footer_branch
      %29 = sbr.rel target = $region3
    $region8: #{tpu_custom_call.1} parent=1 // loop_exit
      _
    %1256 = vsyncpa [#allocation5], 1
    %s1257 = scalar_lea.sflag [#allocation5], 1
    %1258 = vsyncpa %s1257, 1
    %1259 = vsyncpa [#allocation8], 1
    %s1260 = scalar_lea.sflag [#allocation8], 1
    %1261 = vsyncpa %s1260, 1
    %1262 = vsyncpa [#allocation11], 1
    %1263 = vsyncpa [#allocation6], 1
    %s1264 = scalar_lea.sflag [#allocation6], 1
    %1265 = vsyncpa %s1264, 1
    %1266 = vsyncpa [#allocation15], 1
    %s1267 = scalar_lea.sflag [#allocation15], 1
    %1268 = vsyncpa %s1267, 1

</llo_original>
